<compile_context>
chip_gen: v6e
topology: v6e:2x2x1
jax: 0.10.0
libtpu: 0.0.40
codegen_flags: <defaults>
</compile_context>

<pallas_src>
import functools

import jax
import jax.numpy as jnp
from jax.experimental import pallas as pl
from jax.experimental.pallas import tpu as pltpu


def _mlp_kernel(t_ref, x_ref, w_t_ref, w_x_ref, b_in_ref,
                w_h_ref, b_h_ref, w_out_ref, b_out_ref, o_ref,
                *, num_layers, matmul_dtype):
    # ---- Input layer (feature-major): z = W_t * t + W_x @ x + b_in ----
    # x_ref: (2, TB), w_x_ref: (NN, 2)  -> (NN, TB)   (tiny K=2 MXU pass)
    z = jnp.dot(w_x_ref[...], x_ref[...], preferred_element_type=jnp.float32)
    # w_t_ref: (NN, 1), t_ref: (1, TB) -> broadcast outer product on the VPU.
    z = z + w_t_ref[...] * t_ref[...] + b_in_ref[...]
    h = jnp.tanh(z)                                   # f32 tanh (EUP)

    # ---- Hidden layers: bf16 MXU matmuls, f32 accumulation & activations ----
    for i in range(num_layers):                       # static unroll (small NL)
        z = jnp.dot(w_h_ref[i], h.astype(matmul_dtype),
                    preferred_element_type=jnp.float32) + b_h_ref[i]
        h = jnp.tanh(z)

    # ---- Output layer: (1, NN) @ (NN, TB) -> (1, TB); lane-dense store ----
    o_ref[...] = (
        jnp.dot(w_out_ref[...], h, preferred_element_type=jnp.float32)
        + b_out_ref[...]
    ).astype(o_ref.dtype)


def net_forward(t, x, params, *, num_layers, tile_b=256,
                matmul_dtype=jnp.bfloat16):
    """t: (B, 1), x: (B, 2) -> out: (B, 1). Matches torch Net.forward."""
    w_in, b_in, w_h, b_h, w_out, b_out = params       # PyTorch Linear layouts
    NN = w_in.shape[0]
    B = t.shape[0]

    n_tiles = pl.cdiv(B, tile_b)
    b_pad = n_tiles * tile_b
    pad = b_pad - B

    # Feature-major inputs: batch mapped to the lane axis, zero-padded.
    t_row = jnp.pad(t.astype(jnp.float32).T, ((0, 0), (0, pad)))   # (1, B_pad)
    x_cols = jnp.pad(x.astype(jnp.float32).T, ((0, 0), (0, pad)))  # (2, B_pad)

    # One-time parameter layout plumbing (outside the kernel, no per-call XLU).
    w_t = w_in[:, 0:1]                                 # (NN, 1)  f32
    w_x = w_in[:, 1:]                                  # (NN, 2)  f32
    b_in_c = b_in.reshape(NN, 1)                       # (NN, 1)  f32
    w_h_c = w_h.astype(matmul_dtype)                   # (NL, NN, NN)
    b_h_c = b_h.reshape(num_layers, NN, 1)             # (NL, NN, 1) f32
    w_out_c = w_out                                    # (1, NN)  f32
    b_out_c = b_out.reshape(1, 1)                      # (1, 1)   f32

    def resident(shape):
        # Whole array in VMEM, same block every grid step -> no re-DMA.
        zeros = (0,) * len(shape)
        return pl.BlockSpec(shape, lambda i: zeros)

    kernel = functools.partial(_mlp_kernel, num_layers=num_layers,
                               matmul_dtype=matmul_dtype)

    out = pl.pallas_call(
        kernel,
        out_shape=jax.ShapeDtypeStruct((1, b_pad), jnp.float32),
        grid=(n_tiles,),
        in_specs=[
            pl.BlockSpec((1, tile_b), lambda i: (0, i)),   # t (lane-tiled)
            pl.BlockSpec((2, tile_b), lambda i: (0, i)),   # x (lane-tiled)
            resident(w_t.shape),
            resident(w_x.shape),
            resident(b_in_c.shape),
            resident(w_h_c.shape),
            resident(b_h_c.shape),
            resident(w_out_c.shape),
            resident(b_out_c.shape),
        ],
        out_specs=pl.BlockSpec((1, tile_b), lambda i: (0, i)),
        compiler_params=pltpu.CompilerParams(
            dimension_semantics=("parallel",)),            # megacore on v7x
    )(t_row, x_cols, w_t, w_x, b_in_c, w_h_c, b_h_c, w_out_c, b_out_c)

    return out[0, :B].reshape(B, 1)


def init_params(key, NL, NN, in_dim=3):
    """Deterministic synthetic params with torch.nn.Linear shape conventions."""
    ks = jax.random.split(key, 6)
    s = 0.1
    w_in = s * jax.random.normal(ks[0], (NN, in_dim), jnp.float32)
    b_in = s * jax.random.normal(ks[1], (NN,), jnp.float32)
    w_h = s * jax.random.normal(ks[2], (NL, NN, NN), jnp.float32)
    b_h = s * jax.random.normal(ks[3], (NL, NN), jnp.float32)
    w_out = s * jax.random.normal(ks[4], (1, NN), jnp.float32)
    b_out = s * jax.random.normal(ks[5], (1,), jnp.float32)
    return (w_in, b_in, w_h, b_h, w_out, b_out)


def net_forward_ref(t, x, params, *, num_layers, matmul_dtype=jnp.float32):
    """Pure-JAX reference of the PyTorch forward (mirrors the matmul dtype)."""
    w_in, b_in, w_h, b_h, w_out, b_out = params
    h = jnp.tanh(jnp.concatenate([t, x], axis=1) @ w_in.T + b_in[None, :])
    wh = w_h.astype(matmul_dtype)
    for i in range(num_layers):
        z = jnp.dot(h.astype(matmul_dtype), wh[i].T,
                    preferred_element_type=jnp.float32) + b_h[i][None, :]
        h = jnp.tanh(z)
    return h @ w_out.T + b_out[None, :]


if __name__ == "__main__":
    NL, NN, B = 3, 128, 512   # NN=128 fills the lane dim; B=512 -> 2 batch tiles

    key = jax.random.PRNGKey(0)
    kp, kt, kx = jax.random.split(key, 3)
    params = init_params(kp, NL, NN)
    t = jax.random.normal(kt, (B, 1), jnp.float32)
    x = jax.random.normal(kx, (B, 2), jnp.float32)

    # Structural check: all-f32 kernel path vs pure-JAX reference (tight tol).
    out_f32 = jax.block_until_ready(
        net_forward(t, x, params, num_layers=NL, matmul_dtype=jnp.float32))
    ref_f32 = net_forward_ref(t, x, params, num_layers=NL,
                              matmul_dtype=jnp.float32)
    assert out_f32.shape == (B, 1)
    assert jnp.allclose(out_f32, ref_f32, atol=1e-4, rtol=1e-4)

    # Fast path (default): bf16 MXU matmuls with f32 accumulation.
    out_bf16 = jax.block_until_ready(net_forward(t, x, params, num_layers=NL))
    ref_bf16 = net_forward_ref(t, x, params, num_layers=NL,
                               matmul_dtype=jnp.bfloat16)
    assert out_bf16.shape == (B, 1)
    assert jnp.allclose(out_bf16, ref_bf16, atol=1e-2, rtol=1e-2)

    print("KERNEL_OK")
</pallas_src>

<mosaic_0001>
module attributes {stable_mosaic.version = 11 : i64} {
  func.func @_mlp_kernel(%arg0: i32, %arg1: memref<1x256xf32, #tpu.memory_space<vmem>>, %arg2: memref<2x256xf32, #tpu.memory_space<vmem>>, %arg3: memref<128x1xf32, #tpu.memory_space<vmem>>, %arg4: memref<128x2xf32, #tpu.memory_space<vmem>>, %arg5: memref<128x1xf32, #tpu.memory_space<vmem>>, %arg6: memref<3x128x128xf32, #tpu.memory_space<vmem>>, %arg7: memref<3x128x1xf32, #tpu.memory_space<vmem>>, %arg8: memref<1x128xf32, #tpu.memory_space<vmem>>, %arg9: memref<1x1xf32, #tpu.memory_space<vmem>>, %arg10: memref<1x256xf32, #tpu.memory_space<vmem>>) attributes {dimension_semantics = [#tpu.dimension_semantics<parallel>], iteration_bounds = array<i64: 2>, scalar_prefetch = 0 : i64, scratch_operands = 0 : i64, tpu.core_type = #tpu.core_type<tc>, window_params = [{transform_indices = @transform_0, window_bounds = array<i64: 1, 256>}, {transform_indices = @transform_1, window_bounds = array<i64: 2, 256>}, {pipeline_mode = #tpu.pipeline_mode<synchronous>, transform_indices = @transform_2, window_bounds = array<i64: 128, 1>}, {pipeline_mode = #tpu.pipeline_mode<synchronous>, transform_indices = @transform_3, window_bounds = array<i64: 128, 2>}, {pipeline_mode = #tpu.pipeline_mode<synchronous>, transform_indices = @transform_4, window_bounds = array<i64: 128, 1>}, {pipeline_mode = #tpu.pipeline_mode<synchronous>, transform_indices = @transform_5, window_bounds = array<i64: 3, 128, 128>}, {pipeline_mode = #tpu.pipeline_mode<synchronous>, transform_indices = @transform_6, window_bounds = array<i64: 3, 128, 1>}, {pipeline_mode = #tpu.pipeline_mode<synchronous>, transform_indices = @transform_7, window_bounds = array<i64: 1, 128>}, {pipeline_mode = #tpu.pipeline_mode<synchronous>, transform_indices = @transform_8, window_bounds = array<i64: 1, 1>}, {transform_indices = @transform_9, window_bounds = array<i64: 1, 256>}]} {
    %c0 = arith.constant 0 : index
    %c0_0 = arith.constant 0 : index
    %0 = vector.load %arg4[%c0, %c0_0] : memref<128x2xf32, #tpu.memory_space<vmem>>, vector<128x2xf32>
    %c0_1 = arith.constant 0 : index
    %c0_2 = arith.constant 0 : index
    %1 = vector.load %arg2[%c0_1, %c0_2] : memref<2x256xf32, #tpu.memory_space<vmem>>, vector<2x256xf32>
    %cst = arith.constant dense<0.000000e+00> : vector<128x256xf32>
    %2 = tpu.matmul %0, %1, %cst {dimension_numbers = #tpu.dot_dimension_numbers<[1], [0], [0], [1], [0, 0, 1, 1], [], []>} : vector<128x2xf32>, vector<2x256xf32>, vector<128x256xf32> -> vector<128x256xf32>
    %c0_3 = arith.constant 0 : index
    %c0_4 = arith.constant 0 : index
    %3 = vector.load %arg3[%c0_3, %c0_4] : memref<128x1xf32, #tpu.memory_space<vmem>>, vector<128x1xf32>
    %c0_5 = arith.constant 0 : index
    %c0_6 = arith.constant 0 : index
    %4 = vector.load %arg1[%c0_5, %c0_6] : memref<1x256xf32, #tpu.memory_space<vmem>>, vector<1x256xf32>
    %5 = vector.broadcast %3 : vector<128x1xf32> to vector<128x256xf32>
    %6 = vector.broadcast %4 : vector<1x256xf32> to vector<128x256xf32>
    %7 = arith.mulf %5, %6 : vector<128x256xf32>
    %8 = arith.addf %2, %7 : vector<128x256xf32>
    %c0_7 = arith.constant 0 : index
    %c0_8 = arith.constant 0 : index
    %9 = vector.load %arg5[%c0_7, %c0_8] : memref<128x1xf32, #tpu.memory_space<vmem>>, vector<128x1xf32>
    %10 = vector.broadcast %9 : vector<128x1xf32> to vector<128x256xf32>
    %11 = arith.addf %8, %10 : vector<128x256xf32>
    %12 = math.tanh %11 : vector<128x256xf32>
    %c0_9 = arith.constant 0 : index
    %c0_10 = arith.constant 0 : index
    %c0_11 = arith.constant 0 : index
    %13 = vector.load %arg6[%c0_9, %c0_10, %c0_11] : memref<3x128x128xf32, #tpu.memory_space<vmem>>, vector<1x128x128xf32>
    %14 = vector.shape_cast %13 : vector<1x128x128xf32> to vector<128x128xf32>
    %cst_12 = arith.constant dense<0.000000e+00> : vector<128x256xf32>
    %15 = tpu.matmul %14, %12, %cst_12 {dimension_numbers = #tpu.dot_dimension_numbers<[1], [0], [0], [1], [0, 0, 1, 1], [], []>} : vector<128x128xf32>, vector<128x256xf32>, vector<128x256xf32> -> vector<128x256xf32>
    %c0_13 = arith.constant 0 : index
    %c0_14 = arith.constant 0 : index
    %c0_15 = arith.constant 0 : index
    %16 = vector.load %arg7[%c0_13, %c0_14, %c0_15] : memref<3x128x1xf32, #tpu.memory_space<vmem>>, vector<1x128x1xf32>
    %17 = vector.shape_cast %16 : vector<1x128x1xf32> to vector<128x1xf32>
    %18 = vector.broadcast %17 : vector<128x1xf32> to vector<128x256xf32>
    %19 = arith.addf %15, %18 : vector<128x256xf32>
    %20 = math.tanh %19 : vector<128x256xf32>
    %c1 = arith.constant 1 : index
    %c0_16 = arith.constant 0 : index
    %c0_17 = arith.constant 0 : index
    %21 = vector.load %arg6[%c1, %c0_16, %c0_17] : memref<3x128x128xf32, #tpu.memory_space<vmem>>, vector<1x128x128xf32>
    %22 = vector.shape_cast %21 : vector<1x128x128xf32> to vector<128x128xf32>
    %cst_18 = arith.constant dense<0.000000e+00> : vector<128x256xf32>
    %23 = tpu.matmul %22, %20, %cst_18 {dimension_numbers = #tpu.dot_dimension_numbers<[1], [0], [0], [1], [0, 0, 1, 1], [], []>} : vector<128x128xf32>, vector<128x256xf32>, vector<128x256xf32> -> vector<128x256xf32>
    %c1_19 = arith.constant 1 : index
    %c0_20 = arith.constant 0 : index
    %c0_21 = arith.constant 0 : index
    %24 = vector.load %arg7[%c1_19, %c0_20, %c0_21] : memref<3x128x1xf32, #tpu.memory_space<vmem>>, vector<1x128x1xf32>
    %25 = vector.shape_cast %24 : vector<1x128x1xf32> to vector<128x1xf32>
    %26 = vector.broadcast %25 : vector<128x1xf32> to vector<128x256xf32>
    %27 = arith.addf %23, %26 : vector<128x256xf32>
    %28 = math.tanh %27 : vector<128x256xf32>
    %c2 = arith.constant 2 : index
    %c0_22 = arith.constant 0 : index
    %c0_23 = arith.constant 0 : index
    %29 = vector.load %arg6[%c2, %c0_22, %c0_23] : memref<3x128x128xf32, #tpu.memory_space<vmem>>, vector<1x128x128xf32>
    %30 = vector.shape_cast %29 : vector<1x128x128xf32> to vector<128x128xf32>
    %cst_24 = arith.constant dense<0.000000e+00> : vector<128x256xf32>
    %31 = tpu.matmul %30, %28, %cst_24 {dimension_numbers = #tpu.dot_dimension_numbers<[1], [0], [0], [1], [0, 0, 1, 1], [], []>} : vector<128x128xf32>, vector<128x256xf32>, vector<128x256xf32> -> vector<128x256xf32>
    %c2_25 = arith.constant 2 : index
    %c0_26 = arith.constant 0 : index
    %c0_27 = arith.constant 0 : index
    %32 = vector.load %arg7[%c2_25, %c0_26, %c0_27] : memref<3x128x1xf32, #tpu.memory_space<vmem>>, vector<1x128x1xf32>
    %33 = vector.shape_cast %32 : vector<1x128x1xf32> to vector<128x1xf32>
    %34 = vector.broadcast %33 : vector<128x1xf32> to vector<128x256xf32>
    %35 = arith.addf %31, %34 : vector<128x256xf32>
    %36 = math.tanh %35 : vector<128x256xf32>
    %c0_28 = arith.constant 0 : index
    %c0_29 = arith.constant 0 : index
    %37 = vector.load %arg8[%c0_28, %c0_29] : memref<1x128xf32, #tpu.memory_space<vmem>>, vector<1x128xf32>
    %cst_30 = arith.constant dense<0.000000e+00> : vector<1x256xf32>
    %38 = tpu.matmul %37, %36, %cst_30 {dimension_numbers = #tpu.dot_dimension_numbers<[1], [0], [0], [1], [0, 0, 1, 1], [], []>} : vector<1x128xf32>, vector<128x256xf32>, vector<1x256xf32> -> vector<1x256xf32>
    %c0_31 = arith.constant 0 : index
    %c0_32 = arith.constant 0 : index
    %39 = vector.load %arg9[%c0_31, %c0_32] : memref<1x1xf32, #tpu.memory_space<vmem>>, vector<1x1xf32>
    %40 = vector.broadcast %39 : vector<1x1xf32> to vector<1x256xf32>
    %41 = arith.addf %38, %40 : vector<1x256xf32>
    %c0_33 = arith.constant 0 : index
    %c0_34 = arith.constant 0 : index
    %42 = vector.load %arg10[%c0_33, %c0_34] : memref<1x256xf32, #tpu.memory_space<vmem>>, vector<1x256xf32>
    tpu.vector_store %arg10[%c0_33, %c0_34], %41 {strides = array<i32>} : memref<1x256xf32, #tpu.memory_space<vmem>>, vector<1x256xf32>,
    return
  }
  func.func @transform_0(%arg0: i32) -> (i32, i32) {
    %c0_i32 = arith.constant 0 : i32
    %c0_i32_0 = arith.constant 0 : i32
    return %c0_i32, %arg0 : i32, i32
  }
  func.func @transform_1(%arg0: i32) -> (i32, i32) {
    %c0_i32 = arith.constant 0 : i32
    %c0_i32_0 = arith.constant 0 : i32
    return %c0_i32, %arg0 : i32, i32
  }
  func.func @transform_2(%arg0: i32) -> (i32, i32) {
    %c0_i32 = arith.constant 0 : i32
    %c0_i32_0 = arith.constant 0 : i32
    %c0_i32_1 = arith.constant 0 : i32
    return %c0_i32, %c0_i32_0 : i32, i32
  }
  func.func @transform_3(%arg0: i32) -> (i32, i32) {
    %c0_i32 = arith.constant 0 : i32
    %c0_i32_0 = arith.constant 0 : i32
    %c0_i32_1 = arith.constant 0 : i32
    return %c0_i32, %c0_i32_0 : i32, i32
  }
  func.func @transform_4(%arg0: i32) -> (i32, i32) {
    %c0_i32 = arith.constant 0 : i32
    %c0_i32_0 = arith.constant 0 : i32
    %c0_i32_1 = arith.constant 0 : i32
    return %c0_i32, %c0_i32_0 : i32, i32
  }
  func.func @transform_5(%arg0: i32) -> (i32, i32, i32) {
    %c0_i32 = arith.constant 0 : i32
    %c0_i32_0 = arith.constant 0 : i32
    %c0_i32_1 = arith.constant 0 : i32
    %c0_i32_2 = arith.constant 0 : i32
    return %c0_i32, %c0_i32_0, %c0_i32_1 : i32, i32, i32
  }
  func.func @transform_6(%arg0: i32) -> (i32, i32, i32) {
    %c0_i32 = arith.constant 0 : i32
    %c0_i32_0 = arith.constant 0 : i32
    %c0_i32_1 = arith.constant 0 : i32
    %c0_i32_2 = arith.constant 0 : i32
    return %c0_i32, %c0_i32_0, %c0_i32_1 : i32, i32, i32
  }
  func.func @transform_7(%arg0: i32) -> (i32, i32) {
    %c0_i32 = arith.constant 0 : i32
    %c0_i32_0 = arith.constant 0 : i32
    %c0_i32_1 = arith.constant 0 : i32
    return %c0_i32, %c0_i32_0 : i32, i32
  }
  func.func @transform_8(%arg0: i32) -> (i32, i32) {
    %c0_i32 = arith.constant 0 : i32
    %c0_i32_0 = arith.constant 0 : i32
    %c0_i32_1 = arith.constant 0 : i32
    return %c0_i32, %c0_i32_0 : i32, i32
  }
  func.func @transform_9(%arg0: i32) -> (i32, i32) {
    %c0_i32 = arith.constant 0 : i32
    %c0_i32_0 = arith.constant 0 : i32
    return %c0_i32, %arg0 : i32, i32
  }
}

</mosaic_0001>

<llo_original>
// kernel: tpu_custom_call.1
$region0: #{tpu_custom_call.1}
  #allocation0 [shape = 'u32[]', space=smem, size = 0x4, offset = 0x4, fixed_abs, tag = 'smem constant byte address 0x4 - core index']
  #allocation1 [shape = 'u32[144,128]{1,0:T(1,128)}', space=vmem, size = 0x12000, scoped, tag = 'internal scratch']
  #allocation2 [shape = 'f32[1,1]{1,0:T(1,128)S(1)}', space=vmem, size = 0x200, scoped, tag = 'scoped memory for tpu_custom_call.1']
  %s0 = inlined_call_operand.vmem [shape: f32[1,512], index: 0, kind: input, shape index: {}]
  %s1 = inlined_call_operand.vmem [shape: f32[2,512], index: 1, kind: input, shape index: {}]
  %s2 = inlined_call_operand.vmem [shape: f32[128,1], index: 2, kind: input, shape index: {}]
  %s3 = inlined_call_operand.vmem [shape: f32[128,2], index: 3, kind: input, shape index: {}]
  %s4 = inlined_call_operand.vmem [shape: f32[128,1], index: 4, kind: input, shape index: {}]
  %s5 = inlined_call_operand.vmem [shape: f32[3,128,128], index: 5, kind: input, shape index: {}]
  %s6 = inlined_call_operand.vmem [shape: f32[3,128,1], index: 6, kind: input, shape index: {}]
  %s7 = inlined_call_operand.vmem [shape: f32[1,128], index: 7, kind: input, shape index: {}]
  %s8 = inlined_call_operand.<no memory space> [shape: f32[1,1], index: 8, kind: input, shape index: {}]
  %s9 = inlined_call_operand.hbm [shape: f32[1,512], index: 9, kind: output, shape index: {}]
  %s10 = sld [smem:[#allocation0]]
  $region69: #{tpu_custom_call.1} parent=0
    _
  %s12 = ssub.s32 1, %s10
  %s13 = scalar_select 0, %s12, %s10
  %v14 = vstv %s8
  %15 = vst [vmem:[#allocation2] sm:$0x1] %v14
  $region1: #{tpu_custom_call.1} parent=0
    #allocation3 [shape = 'u8[2048]{0}', space=vmem, size = 0x800, scoped, tag = 'output window, operand 0']
    #allocation4 [shape = 's32[2]{0}', space=sflag, size = 0x8, scoped, tag = 'scoped memory for tpu_custom_call.1']
    %16 = vsyncpa [#allocation4], 0
    %s17 = scalar_lea.sflag [#allocation4], 1
    %18 = vsyncpa %s17, 0
    loop: start=0, step=1, limit=4
    $region2: #{tpu_custom_call.1} parent=1 // loop_pre_header
      _
    $region3: #{tpu_custom_call.1} parent=1 // loop_header
      %s20 = sphi 0, %s24
      %p21 = scmp.ge.s32.totalorder %s20, 4
      %s30 = sphi 0, %s32
      %s33 = sphi 0, %s30
      %s34 = sphi 0, %s33
      %s50 = sphi 0, %s34
      %s56 = sphi 0, %s58
      %s59 = sphi 0, %s56
      %s60 = sphi 0, %s59
      %s76 = sphi 0, %s60
      %s80 = sphi 0, %s80
      %s82 = sphi 0, %s80
      %s83 = sphi 0, %s82
      %s97 = sphi 0, %s83
      %s101 = sphi 0, %s101
      %s103 = sphi 0, %s101
      %s104 = sphi 0, %s103
      %s118 = sphi 0, %s104
      %s122 = sphi 0, %s122
      %s124 = sphi 0, %s122
      %s125 = sphi 0, %s124
      %s139 = sphi 0, %s125
      %s143 = sphi 0, %s143
      %s145 = sphi 0, %s143
      %s146 = sphi 0, %s145
      %s160 = sphi 0, %s146
      %s164 = sphi 0, %s164
      %s166 = sphi 0, %s164
      %s167 = sphi 0, %s166
      %s181 = sphi 0, %s167
      %s185 = sphi 0, %s185
      %s187 = sphi 0, %s185
      %s188 = sphi 0, %s187
      %s202 = sphi 0, %s188
      %s206 = sphi 0, %s206
      %s208 = sphi 0, %s206
      %s209 = sphi 0, %s208
      %s223 = sphi 0, %s209
      %s229 = sphi 0, %s231
      %s232 = sphi 0, %s229
      %s233 = sphi 0, %s232
      %s249 = sphi 0, %s233
    $region4: #{tpu_custom_call.1} parent=1 // loop_header_branch
      %23 = sbr.rel (%p21) target = $region8
    $region5: #{tpu_custom_call.1} parent=1 // loop_body
      %s25 = ssub.s32 %s20, 1
      %s26 = ssub.s32 %s20, 2
      %s27 = sadd.s32 %s20, 1
      %s28 = ssub.s32 %s20, %s27
      %p29 = scmp.eq.s32.totalorder %s28, 0
      %s31 = sadd.s32 %s30, 1
      %s32 = scalar_select %p29, %s30, %s31
      %p35 = pneg %p29
      %p36 = scmp.eq.s32.totalorder %s20, 1
      %p37 = por %p35, %p36
      %p38 = scmp.ne.s32.totalorder %s30, %s33
      %p39 = scmp.eq.s32.totalorder %s20, 0
      %p40 = por %p38, %p39
      %p41 = scmp.ne.s32.totalorder %s30, %s33
      %p42 = scmp.eq.s32.totalorder %s25, 1
      %p43 = por %p41, %p42
      %p44 = scmp.ne.s32.totalorder %s33, %s34
      %p45 = scmp.eq.s32.totalorder %s25, 0
      %p46 = por %p44, %p45
      %p47 = scmp.ne.s32.totalorder %s33, %s34
      %p48 = scmp.eq.s32.totalorder %s26, 1
      %p49 = por %p47, %p48
      %p51 = scmp.ne.s32.totalorder %s34, %s50
      %p52 = scmp.eq.s32.totalorder %s26, 0
      %p53 = por %p51, %p52
      %s54 = ssub.s32 %s20, %s27
      %p55 = scmp.eq.s32.totalorder %s54, 0
      %s57 = sadd.s32 %s56, 1
      %s58 = scalar_select %p55, %s56, %s57
      %p61 = pneg %p55
      %p62 = scmp.eq.s32.totalorder %s20, 1
      %p63 = por %p61, %p62
      %p64 = scmp.ne.s32.totalorder %s56, %s59
      %p65 = scmp.eq.s32.totalorder %s20, 0
      %p66 = por %p64, %p65
      %p67 = scmp.ne.s32.totalorder %s56, %s59
      %p68 = scmp.eq.s32.totalorder %s25, 1
      %p69 = por %p67, %p68
      %p70 = scmp.ne.s32.totalorder %s59, %s60
      %p71 = scmp.eq.s32.totalorder %s25, 0
      %p72 = por %p70, %p71
      %p73 = scmp.ne.s32.totalorder %s59, %s60
      %p74 = scmp.eq.s32.totalorder %s26, 1
      %p75 = por %p73, %p74
      %p77 = scmp.ne.s32.totalorder %s60, %s76
      %p78 = scmp.eq.s32.totalorder %s26, 0
      %p79 = por %p77, %p78
      %s81 = sadd.s32 %s80, 1
      %p84 = scmp.eq.s32.totalorder %s20, 1
      %p85 = scmp.ne.s32.totalorder %s80, %s82
      %p86 = scmp.eq.s32.totalorder %s20, 0
      %p87 = por %p85, %p86
      %p88 = scmp.ne.s32.totalorder %s80, %s82
      %p89 = scmp.eq.s32.totalorder %s25, 1
      %p90 = por %p88, %p89
      %p91 = scmp.ne.s32.totalorder %s82, %s83
      %p92 = scmp.eq.s32.totalorder %s25, 0
      %p93 = por %p91, %p92
      %p94 = scmp.ne.s32.totalorder %s82, %s83
      %p95 = scmp.eq.s32.totalorder %s26, 1
      %p96 = por %p94, %p95
      %p98 = scmp.ne.s32.totalorder %s83, %s97
      %p99 = scmp.eq.s32.totalorder %s26, 0
      %p100 = por %p98, %p99
      %s102 = sadd.s32 %s101, 1
      %p105 = scmp.eq.s32.totalorder %s20, 1
      %p106 = scmp.ne.s32.totalorder %s101, %s103
      %p107 = scmp.eq.s32.totalorder %s20, 0
      %p108 = por %p106, %p107
      %p109 = scmp.ne.s32.totalorder %s101, %s103
      %p110 = scmp.eq.s32.totalorder %s25, 1
      %p111 = por %p109, %p110
      %p112 = scmp.ne.s32.totalorder %s103, %s104
      %p113 = scmp.eq.s32.totalorder %s25, 0
      %p114 = por %p112, %p113
      %p115 = scmp.ne.s32.totalorder %s103, %s104
      %p116 = scmp.eq.s32.totalorder %s26, 1
      %p117 = por %p115, %p116
      %p119 = scmp.ne.s32.totalorder %s104, %s118
      %p120 = scmp.eq.s32.totalorder %s26, 0
      %p121 = por %p119, %p120
      %s123 = sadd.s32 %s122, 1
      %p126 = scmp.eq.s32.totalorder %s20, 1
      %p127 = scmp.ne.s32.totalorder %s122, %s124
      %p128 = scmp.eq.s32.totalorder %s20, 0
      %p129 = por %p127, %p128
      %p130 = scmp.ne.s32.totalorder %s122, %s124
      %p131 = scmp.eq.s32.totalorder %s25, 1
      %p132 = por %p130, %p131
      %p133 = scmp.ne.s32.totalorder %s124, %s125
      %p134 = scmp.eq.s32.totalorder %s25, 0
      %p135 = por %p133, %p134
      %p136 = scmp.ne.s32.totalorder %s124, %s125
      %p137 = scmp.eq.s32.totalorder %s26, 1
      %p138 = por %p136, %p137
      %p140 = scmp.ne.s32.totalorder %s125, %s139
      %p141 = scmp.eq.s32.totalorder %s26, 0
      %p142 = por %p140, %p141
      %s144 = sadd.s32 %s143, 1
      %p147 = scmp.eq.s32.totalorder %s20, 1
      %p148 = scmp.ne.s32.totalorder %s143, %s145
      %p149 = scmp.eq.s32.totalorder %s20, 0
      %p150 = por %p148, %p149
      %p151 = scmp.ne.s32.totalorder %s143, %s145
      %p152 = scmp.eq.s32.totalorder %s25, 1
      %p153 = por %p151, %p152
      %p154 = scmp.ne.s32.totalorder %s145, %s146
      %p155 = scmp.eq.s32.totalorder %s25, 0
      %p156 = por %p154, %p155
      %p157 = scmp.ne.s32.totalorder %s145, %s146
      %p158 = scmp.eq.s32.totalorder %s26, 1
      %p159 = por %p157, %p158
      %p161 = scmp.ne.s32.totalorder %s146, %s160
      %p162 = scmp.eq.s32.totalorder %s26, 0
      %p163 = por %p161, %p162
      %s165 = sadd.s32 %s164, 1
      %p168 = scmp.eq.s32.totalorder %s20, 1
      %p169 = scmp.ne.s32.totalorder %s164, %s166
      %p170 = scmp.eq.s32.totalorder %s20, 0
      %p171 = por %p169, %p170
      %p172 = scmp.ne.s32.totalorder %s164, %s166
      %p173 = scmp.eq.s32.totalorder %s25, 1
      %p174 = por %p172, %p173
      %p175 = scmp.ne.s32.totalorder %s166, %s167
      %p176 = scmp.eq.s32.totalorder %s25, 0
      %p177 = por %p175, %p176
      %p178 = scmp.ne.s32.totalorder %s166, %s167
      %p179 = scmp.eq.s32.totalorder %s26, 1
      %p180 = por %p178, %p179
      %p182 = scmp.ne.s32.totalorder %s167, %s181
      %p183 = scmp.eq.s32.totalorder %s26, 0
      %p184 = por %p182, %p183
      %s186 = sadd.s32 %s185, 1
      %p189 = scmp.eq.s32.totalorder %s20, 1
      %p190 = scmp.ne.s32.totalorder %s185, %s187
      %p191 = scmp.eq.s32.totalorder %s20, 0
      %p192 = por %p190, %p191
      %p193 = scmp.ne.s32.totalorder %s185, %s187
      %p194 = scmp.eq.s32.totalorder %s25, 1
      %p195 = por %p193, %p194
      %p196 = scmp.ne.s32.totalorder %s187, %s188
      %p197 = scmp.eq.s32.totalorder %s25, 0
      %p198 = por %p196, %p197
      %p199 = scmp.ne.s32.totalorder %s187, %s188
      %p200 = scmp.eq.s32.totalorder %s26, 1
      %p201 = por %p199, %p200
      %p203 = scmp.ne.s32.totalorder %s188, %s202
      %p204 = scmp.eq.s32.totalorder %s26, 0
      %p205 = por %p203, %p204
      %s207 = sadd.s32 %s206, 1
      %p210 = scmp.eq.s32.totalorder %s20, 1
      %p211 = scmp.ne.s32.totalorder %s206, %s208
      %p212 = scmp.eq.s32.totalorder %s20, 0
      %p213 = por %p211, %p212
      %p214 = scmp.ne.s32.totalorder %s206, %s208
      %p215 = scmp.eq.s32.totalorder %s25, 1
      %p216 = por %p214, %p215
      %p217 = scmp.ne.s32.totalorder %s208, %s209
      %p218 = scmp.eq.s32.totalorder %s25, 0
      %p219 = por %p217, %p218
      %p220 = scmp.ne.s32.totalorder %s208, %s209
      %p221 = scmp.eq.s32.totalorder %s26, 1
      %p222 = por %p220, %p221
      %p224 = scmp.ne.s32.totalorder %s209, %s223
      %p225 = scmp.eq.s32.totalorder %s26, 0
      %p226 = por %p224, %p225
      %s227 = ssub.s32 %s20, %s27
      %p228 = scmp.eq.s32.totalorder %s227, 0
      %s230 = sadd.s32 %s229, 1
      %s231 = scalar_select %p228, %s229, %s230
      %p234 = pneg %p228
      %p235 = scmp.eq.s32.totalorder %s20, 1
      %p236 = por %p234, %p235
      %p237 = scmp.ne.s32.totalorder %s229, %s232
      %p238 = scmp.eq.s32.totalorder %s20, 0
      %p239 = por %p237, %p238
      %p240 = scmp.ne.s32.totalorder %s229, %s232
      %p241 = scmp.eq.s32.totalorder %s25, 1
      %p242 = por %p240, %p241
      %p243 = scmp.ne.s32.totalorder %s232, %s233
      %p244 = scmp.eq.s32.totalorder %s25, 0
      %p245 = por %p243, %p244
      %p246 = scmp.ne.s32.totalorder %s232, %s233
      %p247 = scmp.eq.s32.totalorder %s26, 1
      %p248 = por %p246, %p247
      %p250 = scmp.ne.s32.totalorder %s233, %s249
      %p251 = scmp.eq.s32.totalorder %s26, 0
      %p252 = por %p250, %p251
      %p253 = scmp.le.s32.totalorder 1, %s20
      %p254 = scmp.lt.s32.totalorder %s20, 3
      %p255 = pnand %p253, %p254
      %p256 = pneg %p255
      // Predicated region
      $region9: #{tpu_custom_call.1} parent=5 // pred_check
        _
      $region10: #{tpu_custom_call.1} parent=5 // pred_check_branch
        %258 = sbr.rel (%p255) target = $region12
      $region11: #{tpu_custom_call.1} parent=5 // pred_region
        %s259 = ssub.s32 %s20, 1
        // Predicated region
        $region13: #{tpu_custom_call.1} parent=11 // pred_check
          %p260 = pneg %p93
        $region14: #{tpu_custom_call.1} parent=11 // pred_check_branch
          %262 = sbr.rel (%p260) target = $region16
        $region15: #{tpu_custom_call.1} parent=11 // pred_region
          _
        $region16: #{tpu_custom_call.1} parent=11 // pred_fallthru
          _
        // Predicated region
        $region17: #{tpu_custom_call.1} parent=11 // pred_check
          %p263 = pneg %p114
        $region18: #{tpu_custom_call.1} parent=11 // pred_check_branch
          %265 = sbr.rel (%p263) target = $region20
        $region19: #{tpu_custom_call.1} parent=11 // pred_region
          _
        $region20: #{tpu_custom_call.1} parent=11 // pred_fallthru
          _
        // Predicated region
        $region21: #{tpu_custom_call.1} parent=11 // pred_check
          %p266 = pneg %p135
        $region22: #{tpu_custom_call.1} parent=11 // pred_check_branch
          %268 = sbr.rel (%p266) target = $region24
        $region23: #{tpu_custom_call.1} parent=11 // pred_region
          _
        $region24: #{tpu_custom_call.1} parent=11 // pred_fallthru
          _
        // Predicated region
        $region25: #{tpu_custom_call.1} parent=11 // pred_check
          %p269 = pneg %p156
        $region26: #{tpu_custom_call.1} parent=11 // pred_check_branch
          %271 = sbr.rel (%p269) target = $region28
        $region27: #{tpu_custom_call.1} parent=11 // pred_region
          _
        $region28: #{tpu_custom_call.1} parent=11 // pred_fallthru
          _
        // Predicated region
        $region29: #{tpu_custom_call.1} parent=11 // pred_check
          %p272 = pneg %p177
        $region30: #{tpu_custom_call.1} parent=11 // pred_check_branch
          %274 = sbr.rel (%p272) target = $region32
        $region31: #{tpu_custom_call.1} parent=11 // pred_region
          _
        $region32: #{tpu_custom_call.1} parent=11 // pred_fallthru
          _
        // Predicated region
        $region33: #{tpu_custom_call.1} parent=11 // pred_check
          %p275 = pneg %p198
        $region34: #{tpu_custom_call.1} parent=11 // pred_check_branch
          %277 = sbr.rel (%p275) target = $region36
        $region35: #{tpu_custom_call.1} parent=11 // pred_region
          _
        $region36: #{tpu_custom_call.1} parent=11 // pred_fallthru
          _
        // Predicated region
        $region37: #{tpu_custom_call.1} parent=11 // pred_check
          %p278 = pneg %p219
        $region38: #{tpu_custom_call.1} parent=11 // pred_check_branch
          %280 = sbr.rel (%p278) target = $region40
        $region39: #{tpu_custom_call.1} parent=11 // pred_region
          _
        $region40: #{tpu_custom_call.1} parent=11 // pred_fallthru
          _
      $region12: #{tpu_custom_call.1} parent=5 // pred_fallthru
        _
      %p281 = scmp.lt.s32.totalorder %s20, 2
      // Predicated region
      $region41: #{tpu_custom_call.1} parent=5 // pred_check
        %p282 = pneg %p281
      $region42: #{tpu_custom_call.1} parent=5 // pred_check_branch
        %284 = sbr.rel (%p282) target = $region44
      $region43: #{tpu_custom_call.1} parent=5 // pred_region
        // Predicated region
        $region45: #{tpu_custom_call.1} parent=43 // pred_check
          %p285 = pneg %p40
        $region46: #{tpu_custom_call.1} parent=43 // pred_check_branch
          %287 = sbr.rel (%p285) target = $region48
        $region47: #{tpu_custom_call.1} parent=43 // pred_region
          %s288 = smul.u32 2, %s20
          %p289 = scmp.lt.s32.totalorder %s288, 3
          %s290 = scalar_select %p289, %s288, 3
          %s291 = scalar_lea.vmem %s0, %s290
          %s292 = smul.u32 2, %s20
        $region48: #{tpu_custom_call.1} parent=43 // pred_fallthru
          _
        // Predicated region
        $region49: #{tpu_custom_call.1} parent=43 // pred_check
          %p293 = pneg %p66
        $region50: #{tpu_custom_call.1} parent=43 // pred_check_branch
          %295 = sbr.rel (%p293) target = $region52
        $region51: #{tpu_custom_call.1} parent=43 // pred_region
          %s296 = smul.u32 2, %s20
          %p297 = scmp.lt.s32.totalorder %s296, 3
          %s298 = scalar_select %p297, %s296, 3
          %s299 = smul.addr %s298, 2
          %s300 = scalar_lea.vmem %s1, %s299
          %s301 = smul.u32 2, %s20
        $region52: #{tpu_custom_call.1} parent=43 // pred_fallthru
          _
      $region44: #{tpu_custom_call.1} parent=5 // pred_fallthru
        _
      %p302 = scmp.le.s32.totalorder 1, %s20
      %p303 = scmp.lt.s32.totalorder %s20, 3
      %p304 = pnand %p302, %p303
      %p305 = pneg %p304
      // Predicated region
      $region53: #{tpu_custom_call.1} parent=5 // pred_check
        _
      $region54: #{tpu_custom_call.1} parent=5 // pred_check_branch
        %307 = sbr.rel (%p304) target = $region56
      $region55: #{tpu_custom_call.1} parent=5 // pred_region
        %s308 = ssub.s32 %s20, 1
        %s309 = smul.u32 2, %s25
        %p310 = scmp.lt.s32.totalorder %s309, 3
        %s311 = scalar_select %p310, %s309, 3
        %s312 = scalar_lea.vmem %s0, %s311
        %p313 = pneg %p46
        %p314 = pneg %p43
        %s315 = smul.u32 2, %s25
        %p316 = scmp.lt.s32.totalorder %s315, 3
        %s317 = scalar_select %p316, %s315, 3
        %s318 = smul.addr %s317, 2
        %s319 = scalar_lea.vmem %s1, %s318
        %p320 = pneg %p72
        %p321 = pneg %p69
        %p322 = pneg %p93
        %p323 = pneg %p90
        %p324 = pneg %p114
        %p325 = pneg %p111
        %p326 = pneg %p135
        %p327 = pneg %p132
        %p328 = pneg %p156
        %p329 = pneg %p153
        %p330 = pneg %p177
        %p331 = pneg %p174
        %p332 = pneg %p198
        %p333 = pneg %p195
        %p334 = pneg %p219
        %p335 = pneg %p216
        %p336 = pneg %p245
        %p337 = pneg %p242
        %s338 = sand.u32 %s232, 1
        %s339 = scalar_lea.sflag [#allocation4], %s338
        %s340 = sand.u32 %s232, 1
        %s341 = smul.addr %s340, 2
        %s342 = scalar_lea.vmem [#allocation3], %s341
        %s343 = smul.u32 2, %s25
        %p344 = scmp.lt.s32.totalorder %s343, 3
        %s345 = scalar_select %p344, %s343, 3
        %s346 = scalar_lea.vmem %s0, %s345
        %s347 = smul.u32 2, %s25
        %s348 = smul.u32 2, %s25
        %p349 = scmp.lt.s32.totalorder %s348, 3
        %s350 = scalar_select %p349, %s348, 3
        %s351 = smul.addr %s350, 2
        %s352 = scalar_lea.vmem %s1, %s351
        %s353 = smul.u32 2, %s25
        %s354 = smul.u32 2, %s25
        %v355 = vld [vmem:[%s3] sm:$0xff]
        %v356 = vld [vmem:[%s3 + $0x8] sm:$0xff]
        %v357 = vld [vmem:[%s3 + $0x10] sm:$0xff]
        %v358 = vld [vmem:[%s3 + $0x18] sm:$0xff]
        %v359 = vld [vmem:[%s3 + $0x20] sm:$0xff]
        %v360 = vld [vmem:[%s3 + $0x28] sm:$0xff]
        %v361 = vld [vmem:[%s3 + $0x30] sm:$0xff]
        %v362 = vld [vmem:[%s3 + $0x38] sm:$0xff]
        %v363 = vld [vmem:[%s3 + $0x40] sm:$0xff]
        %v364 = vld [vmem:[%s3 + $0x48] sm:$0xff]
        %v365 = vld [vmem:[%s3 + $0x50] sm:$0xff]
        %v366 = vld [vmem:[%s3 + $0x58] sm:$0xff]
        %v367 = vld [vmem:[%s3 + $0x60] sm:$0xff]
        %v368 = vld [vmem:[%s3 + $0x68] sm:$0xff]
        %v369 = vld [vmem:[%s3 + $0x70] sm:$0xff]
        %v370 = vld [vmem:[%s3 + $0x78] sm:$0xff]
        %v371 = vld [vmem:[%s352] sm:$0xf]
        %v372 = vld [vmem:[%s2] sm:$0xff]
        %v373 = vld [vmem:[%s2 + $0x8] sm:$0xff]
        %v374 = vld [vmem:[%s2 + $0x10] sm:$0xff]
        %v375 = vld [vmem:[%s2 + $0x18] sm:$0xff]
        %v376 = vld [vmem:[%s2 + $0x20] sm:$0xff]
        %v377 = vld [vmem:[%s2 + $0x28] sm:$0xff]
        %v378 = vld [vmem:[%s2 + $0x30] sm:$0xff]
        %v379 = vld [vmem:[%s2 + $0x38] sm:$0xff]
        %v380 = vld [vmem:[%s2 + $0x40] sm:$0xff]
        %v381 = vld [vmem:[%s2 + $0x48] sm:$0xff]
        %v382 = vld [vmem:[%s2 + $0x50] sm:$0xff]
        %v383 = vld [vmem:[%s2 + $0x58] sm:$0xff]
        %v384 = vld [vmem:[%s2 + $0x60] sm:$0xff]
        %v385 = vld [vmem:[%s2 + $0x68] sm:$0xff]
        %v386 = vld [vmem:[%s2 + $0x70] sm:$0xff]
        %v387 = vld [vmem:[%s2 + $0x78] sm:$0xff]
        %v388 = vld [vmem:[%s346] sm:$0x3]
        %390 = vset.pattern.permute.xlu0 0
        %391 = vperm.xlu0 %390, %v372
        %v392 = vpop.permute.xlu0 %391
        %395 = vset.pattern.permute.xlu0 0
        %396 = vperm.xlu0 %395, %v373
        %v397 = vpop.permute.xlu0 %396
        %400 = vset.pattern.permute.xlu0 0
        %401 = vperm.xlu0 %400, %v374
        %v402 = vpop.permute.xlu0 %401
        %405 = vset.pattern.permute.xlu0 0
        %406 = vperm.xlu0 %405, %v375
        %v407 = vpop.permute.xlu0 %406
        %410 = vset.pattern.permute.xlu0 0
        %411 = vperm.xlu0 %410, %v376
        %v412 = vpop.permute.xlu0 %411
        %415 = vset.pattern.permute.xlu0 0
        %416 = vperm.xlu0 %415, %v377
        %v417 = vpop.permute.xlu0 %416
        %420 = vset.pattern.permute.xlu0 0
        %421 = vperm.xlu0 %420, %v378
        %v422 = vpop.permute.xlu0 %421
        %425 = vset.pattern.permute.xlu0 0
        %426 = vperm.xlu0 %425, %v379
        %v427 = vpop.permute.xlu0 %426
        %430 = vset.pattern.permute.xlu0 0
        %431 = vperm.xlu0 %430, %v380
        %v432 = vpop.permute.xlu0 %431
        %435 = vset.pattern.permute.xlu0 0
        %436 = vperm.xlu0 %435, %v381
        %v437 = vpop.permute.xlu0 %436
        %440 = vset.pattern.permute.xlu0 0
        %441 = vperm.xlu0 %440, %v382
        %v442 = vpop.permute.xlu0 %441
        %445 = vset.pattern.permute.xlu0 0
        %446 = vperm.xlu0 %445, %v383
        %v447 = vpop.permute.xlu0 %446
        %450 = vset.pattern.permute.xlu0 0
        %451 = vperm.xlu0 %450, %v384
        %v452 = vpop.permute.xlu0 %451
        %455 = vset.pattern.permute.xlu0 0
        %456 = vperm.xlu0 %455, %v385
        %v457 = vpop.permute.xlu0 %456
        %460 = vset.pattern.permute.xlu0 0
        %461 = vperm.xlu0 %460, %v386
        %v462 = vpop.permute.xlu0 %461
        %465 = vset.pattern.permute.xlu0 0
        %466 = vperm.xlu0 %465, %v387
        %v467 = vpop.permute.xlu0 %466
        %v470 = vlaneseq
        %v471 = vshrl.u32 %v470, 7
        %v472 = vsub.s32 0, %v471
        %v473 = vrot.slane %v388, %v472
        %v474 = vlaneseq
        %v475 = vshrl.u32 %v474, 7
        %v476 = vsub.s32 1, %v475
        %v477 = vrot.slane %v388, %v476
        %v480 = vmul.f32 %v392, %v473
        %v481 = vmul.f32 %v392, %v477
        %v482 = vmul.f32 %v397, %v473
        %v483 = vmul.f32 %v397, %v477
        %v484 = vmul.f32 %v402, %v473
        %v485 = vmul.f32 %v402, %v477
        %v486 = vmul.f32 %v407, %v473
        %v487 = vmul.f32 %v407, %v477
        %v488 = vmul.f32 %v412, %v473
        %v489 = vmul.f32 %v412, %v477
        %v490 = vmul.f32 %v417, %v473
        %v491 = vmul.f32 %v417, %v477
        %v492 = vmul.f32 %v422, %v473
        %v493 = vmul.f32 %v422, %v477
        %v494 = vmul.f32 %v427, %v473
        %v495 = vmul.f32 %v427, %v477
        %v496 = vmul.f32 %v432, %v473
        %v497 = vmul.f32 %v432, %v477
        %v498 = vmul.f32 %v437, %v473
        %v499 = vmul.f32 %v437, %v477
        %v500 = vmul.f32 %v442, %v473
        %v501 = vmul.f32 %v442, %v477
        %v502 = vmul.f32 %v447, %v473
        %v503 = vmul.f32 %v447, %v477
        %v504 = vmul.f32 %v452, %v473
        %v505 = vmul.f32 %v452, %v477
        %v506 = vmul.f32 %v457, %v473
        %v507 = vmul.f32 %v457, %v477
        %v508 = vmul.f32 %v462, %v473
        %v509 = vmul.f32 %v462, %v477
        %v510 = vmul.f32 %v467, %v473
        %v511 = vmul.f32 %v467, %v477
        %v514 = vunpack.c.l.s4 1983009808
        %v515 = vunpack.c.0.s8 %v514
        %v516 = vlaneseq
        %v517 = vshrl.u32 %v516, 7
        %v518 = vsub.s32 %v515, %v517
        %v519 = vrot.slane %v371, %v518
        %v520 = vcombine.high %v519, %v519
        %vm521 = vcmask 15360
        %v523 = vsel %vm521, %v355, 0
        %v526 = vsel %vm521, %v356, 0
        %v529 = vsel %vm521, %v357, 0
        %v532 = vsel %vm521, %v358, 0
        %v535 = vsel %vm521, %v359, 0
        %v538 = vsel %vm521, %v360, 0
        %v541 = vsel %vm521, %v361, 0
        %v544 = vsel %vm521, %v362, 0
        %v547 = vsel %vm521, %v363, 0
        %v550 = vsel %vm521, %v364, 0
        %v553 = vsel %vm521, %v365, 0
        %v556 = vsel %vm521, %v366, 0
        %v559 = vsel %vm521, %v367, 0
        %v562 = vsel %vm521, %v368, 0
        %v565 = vsel %vm521, %v369, 0
        %v568 = vsel %vm521, %v370, 0
        %vm570 = vcmask 1041408
        %v571 = vsel %vm570, %v519, 0
        %v573 = vsel %vm570, %v520, 0
        %575 = vmatprep.subr.mxu0 0.0
        %576 = vmatpush1.msra.mxu0 0.0
        %577 = vmatprep.subr.mxu0 0.0
        %578 = vmatpush1.msra.mxu0 0.0
        %579 = vmatprep.subr.mxu0 0.0
        %580 = vmatpush1.msra.mxu0 0.0
        %581 = vmatprep.subr.mxu0 0.0
        %582 = vmatpush1.msra.mxu0 0.0
        %583 = vmatprep.subr.mxu0 0.0
        %584 = vmatpush1.msra.mxu0 0.0
        %585 = vmatprep.subr.mxu0 0.0
        %586 = vmatpush1.msra.mxu0 0.0
        %587 = vmatprep.subr.mxu0 0.0
        %588 = vmatpush1.msra.mxu0 0.0
        %589 = vmatprep.subr.mxu0 0.0
        %590 = vmatpush1.msra.mxu0 0.0
        %591 = vmatprep.subr.mxu0 0.0
        %592 = vmatpush1.msra.mxu0 0.0
        %593 = vmatprep.subr.mxu0 0.0
        %594 = vmatpush1.msra.mxu0 0.0
        %595 = vmatprep.subr.mxu0 0.0
        %596 = vmatpush1.msra.mxu0 0.0
        %597 = vmatprep.subr.mxu0 0.0
        %598 = vmatpush1.msra.mxu0 0.0
        %599 = vmatprep.subr.mxu0 0.0
        %600 = vmatpush1.msra.mxu0 0.0
        %601 = vmatprep.subr.mxu0 0.0
        %602 = vmatpush1.msra.mxu0 0.0
        %603 = vmatprep.subr.mxu0 0.0
        %604 = vmatpush1.msra.mxu0 0.0
        %605 = vmatprep.subr.mxu0 %v573
        %606 = vmatpush1.msra.mxu0 %v571
        %607 = vmatprep.subr.mxu0 0.0
        %608 = vmatpush2.msra.mxu0 0.0
        %609 = vmatprep.subr.mxu0 0.0
        %610 = vmatpush2.msra.mxu0 0.0
        %611 = vmatprep.subr.mxu0 0.0
        %612 = vmatpush2.msra.mxu0 0.0
        %613 = vmatprep.subr.mxu0 0.0
        %614 = vmatpush2.msra.mxu0 0.0
        %615 = vmatprep.subr.mxu0 0.0
        %616 = vmatpush2.msra.mxu0 0.0
        %617 = vmatprep.subr.mxu0 0.0
        %618 = vmatpush2.msra.mxu0 0.0
        %619 = vmatprep.subr.mxu0 0.0
        %620 = vmatpush2.msra.mxu0 0.0
        %621 = vmatprep.subr.mxu0 0.0
        %622 = vmatpush2.msra.mxu0 0.0
        %623 = vmatprep.subr.mxu0 0.0
        %624 = vmatpush2.msra.mxu0 0.0
        %625 = vmatprep.subr.mxu0 0.0
        %626 = vmatpush2.msra.mxu0 0.0
        %627 = vmatprep.subr.mxu0 0.0
        %628 = vmatpush2.msra.mxu0 0.0
        %629 = vmatprep.subr.mxu0 0.0
        %630 = vmatpush2.msra.mxu0 0.0
        %631 = vmatprep.subr.mxu0 0.0
        %632 = vmatpush2.msra.mxu0 0.0
        %633 = vmatprep.subr.mxu0 0.0
        %634 = vmatpush2.msra.mxu0 0.0
        %635 = vmatprep.subr.mxu0 0.0
        %636 = vmatpush2.msra.mxu0 0.0
        %637 = vmatprep.subr.mxu0 0.0
        %638 = vmatpush2.msra.mxu0 0.0
        %639 = vmatprep.mubr.f32.mxu0 0.0
        %640 = vmatmul.mubr.f32.gmra.mxu0 %v523
        %v641 = vpop.f32.mrf.mxu0
        %v642 = vadd.f32 %v480, %v641
        %v643 = vpop.f32.mrf.mxu0
        %v644 = vadd.f32 %v481, %v643
        %645 = vmatprep.mubr.f32.mxu0 0.0
        %646 = vmatmul.mubr.f32.gmra.mxu0 %v526
        %v647 = vpop.f32.mrf.mxu0
        %v648 = vadd.f32 %v482, %v647
        %v649 = vpop.f32.mrf.mxu0
        %v650 = vadd.f32 %v483, %v649
        %651 = vmatprep.mubr.f32.mxu0 0.0
        %652 = vmatmul.mubr.f32.gmra.mxu0 %v529
        %v653 = vpop.f32.mrf.mxu0
        %v654 = vadd.f32 %v484, %v653
        %v655 = vpop.f32.mrf.mxu0
        %v656 = vadd.f32 %v485, %v655
        %657 = vmatprep.mubr.f32.mxu0 0.0
        %658 = vmatmul.mubr.f32.gmra.mxu0 %v532
        %v659 = vpop.f32.mrf.mxu0
        %v660 = vadd.f32 %v486, %v659
        %v661 = vpop.f32.mrf.mxu0
        %v662 = vadd.f32 %v487, %v661
        %663 = vmatprep.mubr.f32.mxu0 0.0
        %664 = vmatmul.mubr.f32.gmra.mxu0 %v535
        %v665 = vpop.f32.mrf.mxu0
        %v666 = vadd.f32 %v488, %v665
        %v667 = vpop.f32.mrf.mxu0
        %v668 = vadd.f32 %v489, %v667
        %669 = vmatprep.mubr.f32.mxu0 0.0
        %670 = vmatmul.mubr.f32.gmra.mxu0 %v538
        %v671 = vpop.f32.mrf.mxu0
        %v672 = vadd.f32 %v490, %v671
        %v673 = vpop.f32.mrf.mxu0
        %v674 = vadd.f32 %v491, %v673
        %675 = vmatprep.mubr.f32.mxu0 0.0
        %676 = vmatmul.mubr.f32.gmra.mxu0 %v541
        %v677 = vpop.f32.mrf.mxu0
        %v678 = vadd.f32 %v492, %v677
        %v679 = vpop.f32.mrf.mxu0
        %v680 = vadd.f32 %v493, %v679
        %681 = vmatprep.mubr.f32.mxu0 0.0
        %682 = vmatmul.mubr.f32.gmra.mxu0 %v544
        %v683 = vpop.f32.mrf.mxu0
        %v684 = vadd.f32 %v494, %v683
        %v685 = vpop.f32.mrf.mxu0
        %v686 = vadd.f32 %v495, %v685
        %687 = vmatprep.mubr.f32.mxu0 0.0
        %688 = vmatmul.mubr.f32.gmra.mxu0 %v547
        %v689 = vpop.f32.mrf.mxu0
        %v690 = vadd.f32 %v496, %v689
        %v691 = vpop.f32.mrf.mxu0
        %v692 = vadd.f32 %v497, %v691
        %693 = vmatprep.mubr.f32.mxu0 0.0
        %694 = vmatmul.mubr.f32.gmra.mxu0 %v550
        %v695 = vpop.f32.mrf.mxu0
        %v696 = vadd.f32 %v498, %v695
        %v697 = vpop.f32.mrf.mxu0
        %v698 = vadd.f32 %v499, %v697
        %699 = vmatprep.mubr.f32.mxu0 0.0
        %700 = vmatmul.mubr.f32.gmra.mxu0 %v553
        %v701 = vpop.f32.mrf.mxu0
        %v702 = vadd.f32 %v500, %v701
        %v703 = vpop.f32.mrf.mxu0
        %v704 = vadd.f32 %v501, %v703
        %705 = vmatprep.mubr.f32.mxu0 0.0
        %706 = vmatmul.mubr.f32.gmra.mxu0 %v556
        %v707 = vpop.f32.mrf.mxu0
        %v708 = vadd.f32 %v502, %v707
        %v709 = vpop.f32.mrf.mxu0
        %v710 = vadd.f32 %v503, %v709
        %711 = vmatprep.mubr.f32.mxu0 0.0
        %712 = vmatmul.mubr.f32.gmra.mxu0 %v559
        %v713 = vpop.f32.mrf.mxu0
        %v714 = vadd.f32 %v504, %v713
        %v715 = vpop.f32.mrf.mxu0
        %v716 = vadd.f32 %v505, %v715
        %717 = vmatprep.mubr.f32.mxu0 0.0
        %718 = vmatmul.mubr.f32.gmra.mxu0 %v562
        %v719 = vpop.f32.mrf.mxu0
        %v720 = vadd.f32 %v506, %v719
        %v721 = vpop.f32.mrf.mxu0
        %v722 = vadd.f32 %v507, %v721
        %723 = vmatprep.mubr.f32.mxu0 0.0
        %724 = vmatmul.mubr.f32.gmra.mxu0 %v565
        %v725 = vpop.f32.mrf.mxu0
        %v726 = vadd.f32 %v508, %v725
        %v727 = vpop.f32.mrf.mxu0
        %v728 = vadd.f32 %v509, %v727
        %729 = vmatprep.mubr.f32.mxu0 0.0
        %730 = vmatmul.mubr.f32.gmra.mxu0 %v568
        %v731 = vpop.f32.mrf.mxu0
        %v732 = vadd.f32 %v510, %v731
        %v733 = vpop.f32.mrf.mxu0
        %v734 = vadd.f32 %v511, %v733
        %735 = vdwg.mxu0
        %v736 = vld [vmem:[%s4] sm:$0xff]
        %v737 = vld [vmem:[%s4 + $0x8] sm:$0xff]
        %v738 = vld [vmem:[%s4 + $0x10] sm:$0xff]
        %v739 = vld [vmem:[%s4 + $0x18] sm:$0xff]
        %v740 = vld [vmem:[%s4 + $0x20] sm:$0xff]
        %v741 = vld [vmem:[%s4 + $0x28] sm:$0xff]
        %v742 = vld [vmem:[%s4 + $0x30] sm:$0xff]
        %v743 = vld [vmem:[%s4 + $0x38] sm:$0xff]
        %v744 = vld [vmem:[%s4 + $0x40] sm:$0xff]
        %v745 = vld [vmem:[%s4 + $0x48] sm:$0xff]
        %v746 = vld [vmem:[%s4 + $0x50] sm:$0xff]
        %v747 = vld [vmem:[%s4 + $0x58] sm:$0xff]
        %v748 = vld [vmem:[%s4 + $0x60] sm:$0xff]
        %v749 = vld [vmem:[%s4 + $0x68] sm:$0xff]
        %v750 = vld [vmem:[%s4 + $0x70] sm:$0xff]
        %v751 = vld [vmem:[%s4 + $0x78] sm:$0xff]
        %753 = vset.pattern.permute.xlu0 0
        %754 = vperm.xlu0 %753, %v736
        %v755 = vpop.permute.xlu0 %754
        %758 = vset.pattern.permute.xlu0 0
        %759 = vperm.xlu0 %758, %v737
        %v760 = vpop.permute.xlu0 %759
        %763 = vset.pattern.permute.xlu0 0
        %764 = vperm.xlu0 %763, %v738
        %v765 = vpop.permute.xlu0 %764
        %768 = vset.pattern.permute.xlu0 0
        %769 = vperm.xlu0 %768, %v739
        %v770 = vpop.permute.xlu0 %769
        %773 = vset.pattern.permute.xlu0 0
        %774 = vperm.xlu0 %773, %v740
        %v775 = vpop.permute.xlu0 %774
        %778 = vset.pattern.permute.xlu0 0
        %779 = vperm.xlu0 %778, %v741
        %v780 = vpop.permute.xlu0 %779
        %783 = vset.pattern.permute.xlu0 0
        %784 = vperm.xlu0 %783, %v742
        %v785 = vpop.permute.xlu0 %784
        %788 = vset.pattern.permute.xlu0 0
        %789 = vperm.xlu0 %788, %v743
        %v790 = vpop.permute.xlu0 %789
        %793 = vset.pattern.permute.xlu0 0
        %794 = vperm.xlu0 %793, %v744
        %v795 = vpop.permute.xlu0 %794
        %798 = vset.pattern.permute.xlu0 0
        %799 = vperm.xlu0 %798, %v745
        %v800 = vpop.permute.xlu0 %799
        %803 = vset.pattern.permute.xlu0 0
        %804 = vperm.xlu0 %803, %v746
        %v805 = vpop.permute.xlu0 %804
        %808 = vset.pattern.permute.xlu0 0
        %809 = vperm.xlu0 %808, %v747
        %v810 = vpop.permute.xlu0 %809
        %813 = vset.pattern.permute.xlu0 0
        %814 = vperm.xlu0 %813, %v748
        %v815 = vpop.permute.xlu0 %814
        %818 = vset.pattern.permute.xlu0 0
        %819 = vperm.xlu0 %818, %v749
        %v820 = vpop.permute.xlu0 %819
        %823 = vset.pattern.permute.xlu0 0
        %824 = vperm.xlu0 %823, %v750
        %v825 = vpop.permute.xlu0 %824
        %828 = vset.pattern.permute.xlu0 0
        %829 = vperm.xlu0 %828, %v751
        %v830 = vpop.permute.xlu0 %829
        %v832 = vadd.f32 %v642, %v755
        %v833 = vadd.f32 %v644, %v755
        %v834 = vadd.f32 %v648, %v760
        %v835 = vadd.f32 %v650, %v760
        %v836 = vadd.f32 %v654, %v765
        %v837 = vadd.f32 %v656, %v765
        %v838 = vadd.f32 %v660, %v770
        %v839 = vadd.f32 %v662, %v770
        %v840 = vadd.f32 %v666, %v775
        %v841 = vadd.f32 %v668, %v775
        %v842 = vadd.f32 %v672, %v780
        %v843 = vadd.f32 %v674, %v780
        %v844 = vadd.f32 %v678, %v785
        %v845 = vadd.f32 %v680, %v785
        %v846 = vadd.f32 %v684, %v790
        %v847 = vadd.f32 %v686, %v790
        %v848 = vadd.f32 %v690, %v795
        %v849 = vadd.f32 %v692, %v795
        %v850 = vadd.f32 %v696, %v800
        %v851 = vadd.f32 %v698, %v800
        %v852 = vadd.f32 %v702, %v805
        %v853 = vadd.f32 %v704, %v805
        %v854 = vadd.f32 %v708, %v810
        %v855 = vadd.f32 %v710, %v810
        %v856 = vadd.f32 %v714, %v815
        %v857 = vadd.f32 %v716, %v815
        %v858 = vadd.f32 %v720, %v820
        %v859 = vadd.f32 %v722, %v820
        %v860 = vadd.f32 %v726, %v825
        %v861 = vadd.f32 %v728, %v825
        %v862 = vadd.f32 %v732, %v830
        %v863 = vadd.f32 %v734, %v830
        %v864 = vtanh.pop %v832
        %v865 = vtanh.pop %v833
        %v866 = vtanh.pop %v834
        %v867 = vtanh.pop %v835
        %v868 = vtanh.pop %v836
        %v869 = vtanh.pop %v837
        %v870 = vtanh.pop %v838
        %v871 = vtanh.pop %v839
        %v872 = vtanh.pop %v840
        %v873 = vtanh.pop %v841
        %v874 = vtanh.pop %v842
        %v875 = vtanh.pop %v843
        %v876 = vtanh.pop %v844
        %v877 = vtanh.pop %v845
        %v878 = vtanh.pop %v846
        %v879 = vtanh.pop %v847
        %v880 = vtanh.pop %v848
        %v881 = vtanh.pop %v849
        %v882 = vtanh.pop %v850
        %v883 = vtanh.pop %v851
        %v884 = vtanh.pop %v852
        %v885 = vtanh.pop %v853
        %v886 = vtanh.pop %v854
        %v887 = vtanh.pop %v855
        %v888 = vtanh.pop %v856
        %v889 = vtanh.pop %v857
        %v890 = vtanh.pop %v858
        %v891 = vtanh.pop %v859
        %v892 = vtanh.pop %v860
        %v893 = vtanh.pop %v861
        %v894 = vtanh.pop %v862
        %v895 = vtanh.pop %v863
        %v896 = vld [vmem:[%s5] sm:$0xff]
        %v897 = vld [vmem:[%s5 + $0x8] sm:$0xff]
        %v898 = vld [vmem:[%s5 + $0x10] sm:$0xff]
        %v899 = vld [vmem:[%s5 + $0x18] sm:$0xff]
        %v900 = vld [vmem:[%s5 + $0x20] sm:$0xff]
        %v901 = vld [vmem:[%s5 + $0x28] sm:$0xff]
        %v902 = vld [vmem:[%s5 + $0x30] sm:$0xff]
        %v903 = vld [vmem:[%s5 + $0x38] sm:$0xff]
        %v904 = vld [vmem:[%s5 + $0x40] sm:$0xff]
        %v905 = vld [vmem:[%s5 + $0x48] sm:$0xff]
        %v906 = vld [vmem:[%s5 + $0x50] sm:$0xff]
        %v907 = vld [vmem:[%s5 + $0x58] sm:$0xff]
        %v908 = vld [vmem:[%s5 + $0x60] sm:$0xff]
        %v909 = vld [vmem:[%s5 + $0x68] sm:$0xff]
        %v910 = vld [vmem:[%s5 + $0x70] sm:$0xff]
        %v911 = vld [vmem:[%s5 + $0x78] sm:$0xff]
        %v912 = vld [vmem:[%s6] sm:$0xff]
        %v913 = vld [vmem:[%s6 + $0x8] sm:$0xff]
        %v914 = vld [vmem:[%s6 + $0x10] sm:$0xff]
        %v915 = vld [vmem:[%s6 + $0x18] sm:$0xff]
        %v916 = vld [vmem:[%s6 + $0x20] sm:$0xff]
        %v917 = vld [vmem:[%s6 + $0x28] sm:$0xff]
        %v918 = vld [vmem:[%s6 + $0x30] sm:$0xff]
        %v919 = vld [vmem:[%s6 + $0x38] sm:$0xff]
        %v920 = vld [vmem:[%s6 + $0x40] sm:$0xff]
        %v921 = vld [vmem:[%s6 + $0x48] sm:$0xff]
        %v922 = vld [vmem:[%s6 + $0x50] sm:$0xff]
        %v923 = vld [vmem:[%s6 + $0x58] sm:$0xff]
        %v924 = vld [vmem:[%s6 + $0x60] sm:$0xff]
        %v925 = vld [vmem:[%s6 + $0x68] sm:$0xff]
        %v926 = vld [vmem:[%s6 + $0x70] sm:$0xff]
        %v927 = vld [vmem:[%s6 + $0x78] sm:$0xff]
        %929 = vset.pattern.permute.xlu0 0
        %930 = vperm.xlu0 %929, %v912
        %v931 = vpop.permute.xlu0 %930
        %934 = vset.pattern.permute.xlu0 0
        %935 = vperm.xlu0 %934, %v913
        %v936 = vpop.permute.xlu0 %935
        %939 = vset.pattern.permute.xlu0 0
        %940 = vperm.xlu0 %939, %v914
        %v941 = vpop.permute.xlu0 %940
        %944 = vset.pattern.permute.xlu0 0
        %945 = vperm.xlu0 %944, %v915
        %v946 = vpop.permute.xlu0 %945
        %949 = vset.pattern.permute.xlu0 0
        %950 = vperm.xlu0 %949, %v916
        %v951 = vpop.permute.xlu0 %950
        %954 = vset.pattern.permute.xlu0 0
        %955 = vperm.xlu0 %954, %v917
        %v956 = vpop.permute.xlu0 %955
        %959 = vset.pattern.permute.xlu0 0
        %960 = vperm.xlu0 %959, %v918
        %v961 = vpop.permute.xlu0 %960
        %964 = vset.pattern.permute.xlu0 0
        %965 = vperm.xlu0 %964, %v919
        %v966 = vpop.permute.xlu0 %965
        %969 = vset.pattern.permute.xlu0 0
        %970 = vperm.xlu0 %969, %v920
        %v971 = vpop.permute.xlu0 %970
        %974 = vset.pattern.permute.xlu0 0
        %975 = vperm.xlu0 %974, %v921
        %v976 = vpop.permute.xlu0 %975
        %979 = vset.pattern.permute.xlu0 0
        %980 = vperm.xlu0 %979, %v922
        %v981 = vpop.permute.xlu0 %980
        %984 = vset.pattern.permute.xlu0 0
        %985 = vperm.xlu0 %984, %v923
        %v986 = vpop.permute.xlu0 %985
        %989 = vset.pattern.permute.xlu0 0
        %990 = vperm.xlu0 %989, %v924
        %v991 = vpop.permute.xlu0 %990
        %994 = vset.pattern.permute.xlu0 0
        %995 = vperm.xlu0 %994, %v925
        %v996 = vpop.permute.xlu0 %995
        %999 = vset.pattern.permute.xlu0 0
        %1000 = vperm.xlu0 %999, %v926
        %v1001 = vpop.permute.xlu0 %1000
        %1004 = vset.pattern.permute.xlu0 0
        %1005 = vperm.xlu0 %1004, %v927
        %v1006 = vpop.permute.xlu0 %1005
        %1008 = vmatprep.subr.mxu0 %v895
        %1009 = vmatpush1.msra.mxu0 %v894
        %1010 = vmatprep.subr.mxu0 %v893
        %1011 = vmatpush1.msra.mxu0 %v892
        %1012 = vmatprep.subr.mxu0 %v891
        %1013 = vmatpush1.msra.mxu0 %v890
        %1014 = vmatprep.subr.mxu0 %v889
        %1015 = vmatpush1.msra.mxu0 %v888
        %1016 = vmatprep.subr.mxu0 %v887
        %1017 = vmatpush1.msra.mxu0 %v886
        %1018 = vmatprep.subr.mxu0 %v885
        %1019 = vmatpush1.msra.mxu0 %v884
        %1020 = vmatprep.subr.mxu0 %v883
        %1021 = vmatpush1.msra.mxu0 %v882
        %1022 = vmatprep.subr.mxu0 %v881
        %1023 = vmatpush1.msra.mxu0 %v880
        %1024 = vmatprep.subr.mxu0 %v879
        %1025 = vmatpush1.msra.mxu0 %v878
        %1026 = vmatprep.subr.mxu0 %v877
        %1027 = vmatpush1.msra.mxu0 %v876
        %1028 = vmatprep.subr.mxu0 %v875
        %1029 = vmatpush1.msra.mxu0 %v874
        %1030 = vmatprep.subr.mxu0 %v873
        %1031 = vmatpush1.msra.mxu0 %v872
        %1032 = vmatprep.subr.mxu0 %v871
        %1033 = vmatpush1.msra.mxu0 %v870
        %1034 = vmatprep.subr.mxu0 %v869
        %1035 = vmatpush1.msra.mxu0 %v868
        %1036 = vmatprep.subr.mxu0 %v867
        %1037 = vmatpush1.msra.mxu0 %v866
        %1038 = vmatprep.subr.mxu0 %v865
        %1039 = vmatpush1.msra.mxu0 %v864
        %1040 = vmatprep.subr.mxu0 0.0
        %1041 = vmatpush2.msra.mxu0 0.0
        %1042 = vmatprep.subr.mxu0 0.0
        %1043 = vmatpush2.msra.mxu0 0.0
        %1044 = vmatprep.subr.mxu0 0.0
        %1045 = vmatpush2.msra.mxu0 0.0
        %1046 = vmatprep.subr.mxu0 0.0
        %1047 = vmatpush2.msra.mxu0 0.0
        %1048 = vmatprep.subr.mxu0 0.0
        %1049 = vmatpush2.msra.mxu0 0.0
        %1050 = vmatprep.subr.mxu0 0.0
        %1051 = vmatpush2.msra.mxu0 0.0
        %1052 = vmatprep.subr.mxu0 0.0
        %1053 = vmatpush2.msra.mxu0 0.0
        %1054 = vmatprep.subr.mxu0 0.0
        %1055 = vmatpush2.msra.mxu0 0.0
        %1056 = vmatprep.subr.mxu0 0.0
        %1057 = vmatpush2.msra.mxu0 0.0
        %1058 = vmatprep.subr.mxu0 0.0
        %1059 = vmatpush2.msra.mxu0 0.0
        %1060 = vmatprep.subr.mxu0 0.0
        %1061 = vmatpush2.msra.mxu0 0.0
        %1062 = vmatprep.subr.mxu0 0.0
        %1063 = vmatpush2.msra.mxu0 0.0
        %1064 = vmatprep.subr.mxu0 0.0
        %1065 = vmatpush2.msra.mxu0 0.0
        %1066 = vmatprep.subr.mxu0 0.0
        %1067 = vmatpush2.msra.mxu0 0.0
        %1068 = vmatprep.subr.mxu0 0.0
        %1069 = vmatpush2.msra.mxu0 0.0
        %1070 = vmatprep.subr.mxu0 0.0
        %1071 = vmatpush2.msra.mxu0 0.0
        %1072 = vmatprep.mubr.f32.mxu0 0.0
        %1073 = vmatmul.mubr.f32.gmra.mxu0 %v896
        %v1074 = vpop.f32.mrf.mxu0
        %v1075 = vadd.f32 %v931, %v1074
        %v1076 = vpop.f32.mrf.mxu0
        %v1077 = vadd.f32 %v931, %v1076
        %1078 = vmatprep.mubr.f32.mxu0 0.0
        %1079 = vmatmul.mubr.f32.gmra.mxu0 %v897
        %v1080 = vpop.f32.mrf.mxu0
        %v1081 = vadd.f32 %v936, %v1080
        %v1082 = vpop.f32.mrf.mxu0
        %v1083 = vadd.f32 %v936, %v1082
        %1084 = vmatprep.mubr.f32.mxu0 0.0
        %1085 = vmatmul.mubr.f32.gmra.mxu0 %v898
        %v1086 = vpop.f32.mrf.mxu0
        %v1087 = vadd.f32 %v941, %v1086
        %v1088 = vpop.f32.mrf.mxu0
        %v1089 = vadd.f32 %v941, %v1088
        %1090 = vmatprep.mubr.f32.mxu0 0.0
        %1091 = vmatmul.mubr.f32.gmra.mxu0 %v899
        %v1092 = vpop.f32.mrf.mxu0
        %v1093 = vadd.f32 %v946, %v1092
        %v1094 = vpop.f32.mrf.mxu0
        %v1095 = vadd.f32 %v946, %v1094
        %1096 = vmatprep.mubr.f32.mxu0 0.0
        %1097 = vmatmul.mubr.f32.gmra.mxu0 %v900
        %v1098 = vpop.f32.mrf.mxu0
        %v1099 = vadd.f32 %v951, %v1098
        %v1100 = vpop.f32.mrf.mxu0
        %v1101 = vadd.f32 %v951, %v1100
        %1102 = vmatprep.mubr.f32.mxu0 0.0
        %1103 = vmatmul.mubr.f32.gmra.mxu0 %v901
        %v1104 = vpop.f32.mrf.mxu0
        %v1105 = vadd.f32 %v956, %v1104
        %v1106 = vpop.f32.mrf.mxu0
        %v1107 = vadd.f32 %v956, %v1106
        %1108 = vmatprep.mubr.f32.mxu0 0.0
        %1109 = vmatmul.mubr.f32.gmra.mxu0 %v902
        %v1110 = vpop.f32.mrf.mxu0
        %v1111 = vadd.f32 %v961, %v1110
        %v1112 = vpop.f32.mrf.mxu0
        %v1113 = vadd.f32 %v961, %v1112
        %1114 = vmatprep.mubr.f32.mxu0 0.0
        %1115 = vmatmul.mubr.f32.gmra.mxu0 %v903
        %v1116 = vpop.f32.mrf.mxu0
        %v1117 = vadd.f32 %v966, %v1116
        %v1118 = vpop.f32.mrf.mxu0
        %v1119 = vadd.f32 %v966, %v1118
        %1120 = vmatprep.mubr.f32.mxu0 0.0
        %1121 = vmatmul.mubr.f32.gmra.mxu0 %v904
        %v1122 = vpop.f32.mrf.mxu0
        %v1123 = vadd.f32 %v971, %v1122
        %v1124 = vpop.f32.mrf.mxu0
        %v1125 = vadd.f32 %v971, %v1124
        %1126 = vmatprep.mubr.f32.mxu0 0.0
        %1127 = vmatmul.mubr.f32.gmra.mxu0 %v905
        %v1128 = vpop.f32.mrf.mxu0
        %v1129 = vadd.f32 %v976, %v1128
        %v1130 = vpop.f32.mrf.mxu0
        %v1131 = vadd.f32 %v976, %v1130
        %1132 = vmatprep.mubr.f32.mxu0 0.0
        %1133 = vmatmul.mubr.f32.gmra.mxu0 %v906
        %v1134 = vpop.f32.mrf.mxu0
        %v1135 = vadd.f32 %v981, %v1134
        %v1136 = vpop.f32.mrf.mxu0
        %v1137 = vadd.f32 %v981, %v1136
        %1138 = vmatprep.mubr.f32.mxu0 0.0
        %1139 = vmatmul.mubr.f32.gmra.mxu0 %v907
        %v1140 = vpop.f32.mrf.mxu0
        %v1141 = vadd.f32 %v986, %v1140
        %v1142 = vpop.f32.mrf.mxu0
        %v1143 = vadd.f32 %v986, %v1142
        %1144 = vmatprep.mubr.f32.mxu0 0.0
        %1145 = vmatmul.mubr.f32.gmra.mxu0 %v908
        %v1146 = vpop.f32.mrf.mxu0
        %v1147 = vadd.f32 %v991, %v1146
        %v1148 = vpop.f32.mrf.mxu0
        %v1149 = vadd.f32 %v991, %v1148
        %1150 = vmatprep.mubr.f32.mxu0 0.0
        %1151 = vmatmul.mubr.f32.gmra.mxu0 %v909
        %v1152 = vpop.f32.mrf.mxu0
        %v1153 = vadd.f32 %v996, %v1152
        %v1154 = vpop.f32.mrf.mxu0
        %v1155 = vadd.f32 %v996, %v1154
        %1156 = vmatprep.mubr.f32.mxu0 0.0
        %1157 = vmatmul.mubr.f32.gmra.mxu0 %v910
        %v1158 = vpop.f32.mrf.mxu0
        %v1159 = vadd.f32 %v1001, %v1158
        %v1160 = vpop.f32.mrf.mxu0
        %v1161 = vadd.f32 %v1001, %v1160
        %1162 = vmatprep.mubr.f32.mxu0 0.0
        %1163 = vmatmul.mubr.f32.gmra.mxu0 %v911
        %v1164 = vpop.f32.mrf.mxu0
        %v1165 = vadd.f32 %v1006, %v1164
        %v1166 = vpop.f32.mrf.mxu0
        %v1167 = vadd.f32 %v1006, %v1166
        %1168 = vdwg.mxu0
        %v1169 = vtanh.pop %v1075
        %v1170 = vtanh.pop %v1077
        %v1171 = vtanh.pop %v1081
        %v1172 = vtanh.pop %v1083
        %v1173 = vtanh.pop %v1087
        %v1174 = vtanh.pop %v1089
        %v1175 = vtanh.pop %v1093
        %v1176 = vtanh.pop %v1095
        %v1177 = vtanh.pop %v1099
        %v1178 = vtanh.pop %v1101
        %v1179 = vtanh.pop %v1105
        %v1180 = vtanh.pop %v1107
        %v1181 = vtanh.pop %v1111
        %v1182 = vtanh.pop %v1113
        %v1183 = vtanh.pop %v1117
        %v1184 = vtanh.pop %v1119
        %v1185 = vtanh.pop %v1123
        %v1186 = vtanh.pop %v1125
        %v1187 = vtanh.pop %v1129
        %v1188 = vtanh.pop %v1131
        %v1189 = vtanh.pop %v1135
        %v1190 = vtanh.pop %v1137
        %v1191 = vtanh.pop %v1141
        %v1192 = vtanh.pop %v1143
        %v1193 = vtanh.pop %v1147
        %v1194 = vtanh.pop %v1149
        %v1195 = vtanh.pop %v1153
        %v1196 = vtanh.pop %v1155
        %v1197 = vtanh.pop %v1159
        %v1198 = vtanh.pop %v1161
        %v1199 = vtanh.pop %v1165
        %v1200 = vtanh.pop %v1167
        %s1201 = scalar_lea.vmem %s5, 128
        %v1202 = vld [vmem:[%s1201] sm:$0xff]
        %v1203 = vld [vmem:[%s1201 + $0x8] sm:$0xff]
        %v1204 = vld [vmem:[%s1201 + $0x10] sm:$0xff]
        %v1205 = vld [vmem:[%s1201 + $0x18] sm:$0xff]
        %v1206 = vld [vmem:[%s1201 + $0x20] sm:$0xff]
        %v1207 = vld [vmem:[%s1201 + $0x28] sm:$0xff]
        %v1208 = vld [vmem:[%s1201 + $0x30] sm:$0xff]
        %v1209 = vld [vmem:[%s1201 + $0x38] sm:$0xff]
        %v1210 = vld [vmem:[%s1201 + $0x40] sm:$0xff]
        %v1211 = vld [vmem:[%s1201 + $0x48] sm:$0xff]
        %v1212 = vld [vmem:[%s1201 + $0x50] sm:$0xff]
        %v1213 = vld [vmem:[%s1201 + $0x58] sm:$0xff]
        %v1214 = vld [vmem:[%s1201 + $0x60] sm:$0xff]
        %v1215 = vld [vmem:[%s1201 + $0x68] sm:$0xff]
        %v1216 = vld [vmem:[%s1201 + $0x70] sm:$0xff]
        %v1217 = vld [vmem:[%s1201 + $0x78] sm:$0xff]
        %s1218 = scalar_lea.vmem %s6, 128
        %v1219 = vld [vmem:[%s1218] sm:$0xff]
        %v1220 = vld [vmem:[%s1218 + $0x8] sm:$0xff]
        %v1221 = vld [vmem:[%s1218 + $0x10] sm:$0xff]
        %v1222 = vld [vmem:[%s1218 + $0x18] sm:$0xff]
        %v1223 = vld [vmem:[%s1218 + $0x20] sm:$0xff]
        %v1224 = vld [vmem:[%s1218 + $0x28] sm:$0xff]
        %v1225 = vld [vmem:[%s1218 + $0x30] sm:$0xff]
        %v1226 = vld [vmem:[%s1218 + $0x38] sm:$0xff]
        %v1227 = vld [vmem:[%s1218 + $0x40] sm:$0xff]
        %v1228 = vld [vmem:[%s1218 + $0x48] sm:$0xff]
        %v1229 = vld [vmem:[%s1218 + $0x50] sm:$0xff]
        %v1230 = vld [vmem:[%s1218 + $0x58] sm:$0xff]
        %v1231 = vld [vmem:[%s1218 + $0x60] sm:$0xff]
        %v1232 = vld [vmem:[%s1218 + $0x68] sm:$0xff]
        %v1233 = vld [vmem:[%s1218 + $0x70] sm:$0xff]
        %v1234 = vld [vmem:[%s1218 + $0x78] sm:$0xff]
        %1236 = vset.pattern.permute.xlu0 0
        %1237 = vperm.xlu0 %1236, %v1219
        %v1238 = vpop.permute.xlu0 %1237
        %1241 = vset.pattern.permute.xlu0 0
        %1242 = vperm.xlu0 %1241, %v1220
        %v1243 = vpop.permute.xlu0 %1242
        %1246 = vset.pattern.permute.xlu0 0
        %1247 = vperm.xlu0 %1246, %v1221
        %v1248 = vpop.permute.xlu0 %1247
        %1251 = vset.pattern.permute.xlu0 0
        %1252 = vperm.xlu0 %1251, %v1222
        %v1253 = vpop.permute.xlu0 %1252
        %1256 = vset.pattern.permute.xlu0 0
        %1257 = vperm.xlu0 %1256, %v1223
        %v1258 = vpop.permute.xlu0 %1257
        %1261 = vset.pattern.permute.xlu0 0
        %1262 = vperm.xlu0 %1261, %v1224
        %v1263 = vpop.permute.xlu0 %1262
        %1266 = vset.pattern.permute.xlu0 0
        %1267 = vperm.xlu0 %1266, %v1225
        %v1268 = vpop.permute.xlu0 %1267
        %1271 = vset.pattern.permute.xlu0 0
        %1272 = vperm.xlu0 %1271, %v1226
        %v1273 = vpop.permute.xlu0 %1272
        %1276 = vset.pattern.permute.xlu0 0
        %1277 = vperm.xlu0 %1276, %v1227
        %v1278 = vpop.permute.xlu0 %1277
        %1281 = vset.pattern.permute.xlu0 0
        %1282 = vperm.xlu0 %1281, %v1228
        %v1283 = vpop.permute.xlu0 %1282
        %1286 = vset.pattern.permute.xlu0 0
        %1287 = vperm.xlu0 %1286, %v1229
        %v1288 = vpop.permute.xlu0 %1287
        %1291 = vset.pattern.permute.xlu0 0
        %1292 = vperm.xlu0 %1291, %v1230
        %v1293 = vpop.permute.xlu0 %1292
        %1296 = vset.pattern.permute.xlu0 0
        %1297 = vperm.xlu0 %1296, %v1231
        %v1298 = vpop.permute.xlu0 %1297
        %1301 = vset.pattern.permute.xlu0 0
        %1302 = vperm.xlu0 %1301, %v1232
        %v1303 = vpop.permute.xlu0 %1302
        %1306 = vset.pattern.permute.xlu0 0
        %1307 = vperm.xlu0 %1306, %v1233
        %v1308 = vpop.permute.xlu0 %1307
        %1311 = vset.pattern.permute.xlu0 0
        %1312 = vperm.xlu0 %1311, %v1234
        %v1313 = vpop.permute.xlu0 %1312
        %1315 = vmatprep.subr.mxu0 %v1200
        %1316 = vmatpush1.msra.mxu0 %v1199
        %1317 = vmatprep.subr.mxu0 %v1198
        %1318 = vmatpush1.msra.mxu0 %v1197
        %1319 = vmatprep.subr.mxu0 %v1196
        %1320 = vmatpush1.msra.mxu0 %v1195
        %1321 = vmatprep.subr.mxu0 %v1194
        %1322 = vmatpush1.msra.mxu0 %v1193
        %1323 = vmatprep.subr.mxu0 %v1192
        %1324 = vmatpush1.msra.mxu0 %v1191
        %1325 = vmatprep.subr.mxu0 %v1190
        %1326 = vmatpush1.msra.mxu0 %v1189
        %1327 = vmatprep.subr.mxu0 %v1188
        %1328 = vmatpush1.msra.mxu0 %v1187
        %1329 = vmatprep.subr.mxu0 %v1186
        %1330 = vmatpush1.msra.mxu0 %v1185
        %1331 = vmatprep.subr.mxu0 %v1184
        %1332 = vmatpush1.msra.mxu0 %v1183
        %1333 = vmatprep.subr.mxu0 %v1182
        %1334 = vmatpush1.msra.mxu0 %v1181
        %1335 = vmatprep.subr.mxu0 %v1180
        %1336 = vmatpush1.msra.mxu0 %v1179
        %1337 = vmatprep.subr.mxu0 %v1178
        %1338 = vmatpush1.msra.mxu0 %v1177
        %1339 = vmatprep.subr.mxu0 %v1176
        %1340 = vmatpush1.msra.mxu0 %v1175
        %1341 = vmatprep.subr.mxu0 %v1174
        %1342 = vmatpush1.msra.mxu0 %v1173
        %1343 = vmatprep.subr.mxu0 %v1172
        %1344 = vmatpush1.msra.mxu0 %v1171
        %1345 = vmatprep.subr.mxu0 %v1170
        %1346 = vmatpush1.msra.mxu0 %v1169
        %1347 = vmatprep.subr.mxu0 0.0
        %1348 = vmatpush2.msra.mxu0 0.0
        %1349 = vmatprep.subr.mxu0 0.0
        %1350 = vmatpush2.msra.mxu0 0.0
        %1351 = vmatprep.subr.mxu0 0.0
        %1352 = vmatpush2.msra.mxu0 0.0
        %1353 = vmatprep.subr.mxu0 0.0
        %1354 = vmatpush2.msra.mxu0 0.0
        %1355 = vmatprep.subr.mxu0 0.0
        %1356 = vmatpush2.msra.mxu0 0.0
        %1357 = vmatprep.subr.mxu0 0.0
        %1358 = vmatpush2.msra.mxu0 0.0
        %1359 = vmatprep.subr.mxu0 0.0
        %1360 = vmatpush2.msra.mxu0 0.0
        %1361 = vmatprep.subr.mxu0 0.0
        %1362 = vmatpush2.msra.mxu0 0.0
        %1363 = vmatprep.subr.mxu0 0.0
        %1364 = vmatpush2.msra.mxu0 0.0
        %1365 = vmatprep.subr.mxu0 0.0
        %1366 = vmatpush2.msra.mxu0 0.0
        %1367 = vmatprep.subr.mxu0 0.0
        %1368 = vmatpush2.msra.mxu0 0.0
        %1369 = vmatprep.subr.mxu0 0.0
        %1370 = vmatpush2.msra.mxu0 0.0
        %1371 = vmatprep.subr.mxu0 0.0
        %1372 = vmatpush2.msra.mxu0 0.0
        %1373 = vmatprep.subr.mxu0 0.0
        %1374 = vmatpush2.msra.mxu0 0.0
        %1375 = vmatprep.subr.mxu0 0.0
        %1376 = vmatpush2.msra.mxu0 0.0
        %1377 = vmatprep.subr.mxu0 0.0
        %1378 = vmatpush2.msra.mxu0 0.0
        %1379 = vmatprep.mubr.f32.mxu0 0.0
        %1380 = vmatmul.mubr.f32.gmra.mxu0 %v1202
        %v1381 = vpop.f32.mrf.mxu0
        %v1382 = vadd.f32 %v1238, %v1381
        %v1383 = vpop.f32.mrf.mxu0
        %v1384 = vadd.f32 %v1238, %v1383
        %1385 = vmatprep.mubr.f32.mxu0 0.0
        %1386 = vmatmul.mubr.f32.gmra.mxu0 %v1203
        %v1387 = vpop.f32.mrf.mxu0
        %v1388 = vadd.f32 %v1243, %v1387
        %v1389 = vpop.f32.mrf.mxu0
        %v1390 = vadd.f32 %v1243, %v1389
        %1391 = vmatprep.mubr.f32.mxu0 0.0
        %1392 = vmatmul.mubr.f32.gmra.mxu0 %v1204
        %v1393 = vpop.f32.mrf.mxu0
        %v1394 = vadd.f32 %v1248, %v1393
        %v1395 = vpop.f32.mrf.mxu0
        %v1396 = vadd.f32 %v1248, %v1395
        %1397 = vmatprep.mubr.f32.mxu0 0.0
        %1398 = vmatmul.mubr.f32.gmra.mxu0 %v1205
        %v1399 = vpop.f32.mrf.mxu0
        %v1400 = vadd.f32 %v1253, %v1399
        %v1401 = vpop.f32.mrf.mxu0
        %v1402 = vadd.f32 %v1253, %v1401
        %1403 = vmatprep.mubr.f32.mxu0 0.0
        %1404 = vmatmul.mubr.f32.gmra.mxu0 %v1206
        %v1405 = vpop.f32.mrf.mxu0
        %v1406 = vadd.f32 %v1258, %v1405
        %v1407 = vpop.f32.mrf.mxu0
        %v1408 = vadd.f32 %v1258, %v1407
        %1409 = vmatprep.mubr.f32.mxu0 0.0
        %1410 = vmatmul.mubr.f32.gmra.mxu0 %v1207
        %v1411 = vpop.f32.mrf.mxu0
        %v1412 = vadd.f32 %v1263, %v1411
        %v1413 = vpop.f32.mrf.mxu0
        %v1414 = vadd.f32 %v1263, %v1413
        %1415 = vmatprep.mubr.f32.mxu0 0.0
        %1416 = vmatmul.mubr.f32.gmra.mxu0 %v1208
        %v1417 = vpop.f32.mrf.mxu0
        %v1418 = vadd.f32 %v1268, %v1417
        %v1419 = vpop.f32.mrf.mxu0
        %v1420 = vadd.f32 %v1268, %v1419
        %1421 = vmatprep.mubr.f32.mxu0 0.0
        %1422 = vmatmul.mubr.f32.gmra.mxu0 %v1209
        %v1423 = vpop.f32.mrf.mxu0
        %v1424 = vadd.f32 %v1273, %v1423
        %v1425 = vpop.f32.mrf.mxu0
        %v1426 = vadd.f32 %v1273, %v1425
        %1427 = vmatprep.mubr.f32.mxu0 0.0
        %1428 = vmatmul.mubr.f32.gmra.mxu0 %v1210
        %v1429 = vpop.f32.mrf.mxu0
        %v1430 = vadd.f32 %v1278, %v1429
        %v1431 = vpop.f32.mrf.mxu0
        %v1432 = vadd.f32 %v1278, %v1431
        %1433 = vmatprep.mubr.f32.mxu0 0.0
        %1434 = vmatmul.mubr.f32.gmra.mxu0 %v1211
        %v1435 = vpop.f32.mrf.mxu0
        %v1436 = vadd.f32 %v1283, %v1435
        %v1437 = vpop.f32.mrf.mxu0
        %v1438 = vadd.f32 %v1283, %v1437
        %1439 = vmatprep.mubr.f32.mxu0 0.0
        %1440 = vmatmul.mubr.f32.gmra.mxu0 %v1212
        %v1441 = vpop.f32.mrf.mxu0
        %v1442 = vadd.f32 %v1288, %v1441
        %v1443 = vpop.f32.mrf.mxu0
        %v1444 = vadd.f32 %v1288, %v1443
        %1445 = vmatprep.mubr.f32.mxu0 0.0
        %1446 = vmatmul.mubr.f32.gmra.mxu0 %v1213
        %v1447 = vpop.f32.mrf.mxu0
        %v1448 = vadd.f32 %v1293, %v1447
        %v1449 = vpop.f32.mrf.mxu0
        %v1450 = vadd.f32 %v1293, %v1449
        %1451 = vmatprep.mubr.f32.mxu0 0.0
        %1452 = vmatmul.mubr.f32.gmra.mxu0 %v1214
        %v1453 = vpop.f32.mrf.mxu0
        %v1454 = vadd.f32 %v1298, %v1453
        %v1455 = vpop.f32.mrf.mxu0
        %v1456 = vadd.f32 %v1298, %v1455
        %1457 = vmatprep.mubr.f32.mxu0 0.0
        %1458 = vmatmul.mubr.f32.gmra.mxu0 %v1215
        %v1459 = vpop.f32.mrf.mxu0
        %v1460 = vadd.f32 %v1303, %v1459
        %v1461 = vpop.f32.mrf.mxu0
        %v1462 = vadd.f32 %v1303, %v1461
        %1463 = vmatprep.mubr.f32.mxu0 0.0
        %1464 = vmatmul.mubr.f32.gmra.mxu0 %v1216
        %v1465 = vpop.f32.mrf.mxu0
        %v1466 = vadd.f32 %v1308, %v1465
        %v1467 = vpop.f32.mrf.mxu0
        %v1468 = vadd.f32 %v1308, %v1467
        %1469 = vmatprep.mubr.f32.mxu0 0.0
        %1470 = vmatmul.mubr.f32.gmra.mxu0 %v1217
        %v1471 = vpop.f32.mrf.mxu0
        %v1472 = vadd.f32 %v1313, %v1471
        %v1473 = vpop.f32.mrf.mxu0
        %v1474 = vadd.f32 %v1313, %v1473
        %1475 = vdwg.mxu0
        %v1476 = vtanh.pop %v1382
        %v1477 = vtanh.pop %v1384
        %v1478 = vtanh.pop %v1388
        %v1479 = vtanh.pop %v1390
        %v1480 = vtanh.pop %v1394
        %v1481 = vtanh.pop %v1396
        %v1482 = vtanh.pop %v1400
        %v1483 = vtanh.pop %v1402
        %v1484 = vtanh.pop %v1406
        %v1485 = vtanh.pop %v1408
        %v1486 = vtanh.pop %v1412
        %v1487 = vtanh.pop %v1414
        %v1488 = vtanh.pop %v1418
        %v1489 = vtanh.pop %v1420
        %v1490 = vtanh.pop %v1424
        %v1491 = vtanh.pop %v1426
        %v1492 = vtanh.pop %v1430
        %v1493 = vtanh.pop %v1432
        %v1494 = vtanh.pop %v1436
        %v1495 = vtanh.pop %v1438
        %v1496 = vtanh.pop %v1442
        %v1497 = vtanh.pop %v1444
        %v1498 = vtanh.pop %v1448
        %v1499 = vtanh.pop %v1450
        %v1500 = vtanh.pop %v1454
        %v1501 = vtanh.pop %v1456
        %v1502 = vtanh.pop %v1460
        %v1503 = vtanh.pop %v1462
        %v1504 = vtanh.pop %v1466
        %v1505 = vtanh.pop %v1468
        %v1506 = vtanh.pop %v1472
        %v1507 = vtanh.pop %v1474
        %s1508 = scalar_lea.vmem %s5, 256
        %v1509 = vld [vmem:[%s1508] sm:$0xff]
        %v1510 = vld [vmem:[%s1508 + $0x8] sm:$0xff]
        %v1511 = vld [vmem:[%s1508 + $0x10] sm:$0xff]
        %v1512 = vld [vmem:[%s1508 + $0x18] sm:$0xff]
        %v1513 = vld [vmem:[%s1508 + $0x20] sm:$0xff]
        %v1514 = vld [vmem:[%s1508 + $0x28] sm:$0xff]
        %v1515 = vld [vmem:[%s1508 + $0x30] sm:$0xff]
        %v1516 = vld [vmem:[%s1508 + $0x38] sm:$0xff]
        %v1517 = vld [vmem:[%s1508 + $0x40] sm:$0xff]
        %v1518 = vld [vmem:[%s1508 + $0x48] sm:$0xff]
        %v1519 = vld [vmem:[%s1508 + $0x50] sm:$0xff]
        %v1520 = vld [vmem:[%s1508 + $0x58] sm:$0xff]
        %v1521 = vld [vmem:[%s1508 + $0x60] sm:$0xff]
        %v1522 = vld [vmem:[%s1508 + $0x68] sm:$0xff]
        %v1523 = vld [vmem:[%s1508 + $0x70] sm:$0xff]
        %v1524 = vld [vmem:[%s1508 + $0x78] sm:$0xff]
        %s1525 = scalar_lea.vmem %s6, 256
        %v1526 = vld [vmem:[%s1525] sm:$0xff]
        %v1527 = vld [vmem:[%s1525 + $0x8] sm:$0xff]
        %v1528 = vld [vmem:[%s1525 + $0x10] sm:$0xff]
        %v1529 = vld [vmem:[%s1525 + $0x18] sm:$0xff]
        %v1530 = vld [vmem:[%s1525 + $0x20] sm:$0xff]
        %v1531 = vld [vmem:[%s1525 + $0x28] sm:$0xff]
        %v1532 = vld [vmem:[%s1525 + $0x30] sm:$0xff]
        %v1533 = vld [vmem:[%s1525 + $0x38] sm:$0xff]
        %v1534 = vld [vmem:[%s1525 + $0x40] sm:$0xff]
        %v1535 = vld [vmem:[%s1525 + $0x48] sm:$0xff]
        %v1536 = vld [vmem:[%s1525 + $0x50] sm:$0xff]
        %v1537 = vld [vmem:[%s1525 + $0x58] sm:$0xff]
        %v1538 = vld [vmem:[%s1525 + $0x60] sm:$0xff]
        %v1539 = vld [vmem:[%s1525 + $0x68] sm:$0xff]
        %v1540 = vld [vmem:[%s1525 + $0x70] sm:$0xff]
        %v1541 = vld [vmem:[%s1525 + $0x78] sm:$0xff]
        %1543 = vset.pattern.permute.xlu0 0
        %1544 = vperm.xlu0 %1543, %v1526
        %v1545 = vpop.permute.xlu0 %1544
        %1548 = vset.pattern.permute.xlu0 0
        %1549 = vperm.xlu0 %1548, %v1527
        %v1550 = vpop.permute.xlu0 %1549
        %1553 = vset.pattern.permute.xlu0 0
        %1554 = vperm.xlu0 %1553, %v1528
        %v1555 = vpop.permute.xlu0 %1554
        %1558 = vset.pattern.permute.xlu0 0
        %1559 = vperm.xlu0 %1558, %v1529
        %v1560 = vpop.permute.xlu0 %1559
        %1563 = vset.pattern.permute.xlu0 0
        %1564 = vperm.xlu0 %1563, %v1530
        %v1565 = vpop.permute.xlu0 %1564
        %1568 = vset.pattern.permute.xlu0 0
        %1569 = vperm.xlu0 %1568, %v1531
        %v1570 = vpop.permute.xlu0 %1569
        %1573 = vset.pattern.permute.xlu0 0
        %1574 = vperm.xlu0 %1573, %v1532
        %v1575 = vpop.permute.xlu0 %1574
        %1578 = vset.pattern.permute.xlu0 0
        %1579 = vperm.xlu0 %1578, %v1533
        %v1580 = vpop.permute.xlu0 %1579
        %1583 = vset.pattern.permute.xlu0 0
        %1584 = vperm.xlu0 %1583, %v1534
        %v1585 = vpop.permute.xlu0 %1584
        %1588 = vset.pattern.permute.xlu0 0
        %1589 = vperm.xlu0 %1588, %v1535
        %v1590 = vpop.permute.xlu0 %1589
        %1593 = vset.pattern.permute.xlu0 0
        %1594 = vperm.xlu0 %1593, %v1536
        %v1595 = vpop.permute.xlu0 %1594
        %1598 = vset.pattern.permute.xlu0 0
        %1599 = vperm.xlu0 %1598, %v1537
        %v1600 = vpop.permute.xlu0 %1599
        %1603 = vset.pattern.permute.xlu0 0
        %1604 = vperm.xlu0 %1603, %v1538
        %v1605 = vpop.permute.xlu0 %1604
        %1608 = vset.pattern.permute.xlu0 0
        %1609 = vperm.xlu0 %1608, %v1539
        %v1610 = vpop.permute.xlu0 %1609
        %1613 = vset.pattern.permute.xlu0 0
        %1614 = vperm.xlu0 %1613, %v1540
        %v1615 = vpop.permute.xlu0 %1614
        %1618 = vset.pattern.permute.xlu0 0
        %1619 = vperm.xlu0 %1618, %v1541
        %v1620 = vpop.permute.xlu0 %1619
        %1622 = vmatprep.subr.mxu0 %v1507
        %1623 = vmatpush1.msra.mxu0 %v1506
        %1624 = vmatprep.subr.mxu0 %v1505
        %1625 = vmatpush1.msra.mxu0 %v1504
        %1626 = vmatprep.subr.mxu0 %v1503
        %1627 = vmatpush1.msra.mxu0 %v1502
        %1628 = vmatprep.subr.mxu0 %v1501
        %1629 = vmatpush1.msra.mxu0 %v1500
        %1630 = vmatprep.subr.mxu0 %v1499
        %1631 = vmatpush1.msra.mxu0 %v1498
        %1632 = vmatprep.subr.mxu0 %v1497
        %1633 = vmatpush1.msra.mxu0 %v1496
        %1634 = vmatprep.subr.mxu0 %v1495
        %1635 = vmatpush1.msra.mxu0 %v1494
        %1636 = vmatprep.subr.mxu0 %v1493
        %1637 = vmatpush1.msra.mxu0 %v1492
        %1638 = vmatprep.subr.mxu0 %v1491
        %1639 = vmatpush1.msra.mxu0 %v1490
        %1640 = vmatprep.subr.mxu0 %v1489
        %1641 = vmatpush1.msra.mxu0 %v1488
        %1642 = vmatprep.subr.mxu0 %v1487
        %1643 = vmatpush1.msra.mxu0 %v1486
        %1644 = vmatprep.subr.mxu0 %v1485
        %1645 = vmatpush1.msra.mxu0 %v1484
        %1646 = vmatprep.subr.mxu0 %v1483
        %1647 = vmatpush1.msra.mxu0 %v1482
        %1648 = vmatprep.subr.mxu0 %v1481
        %1649 = vmatpush1.msra.mxu0 %v1480
        %1650 = vmatprep.subr.mxu0 %v1479
        %1651 = vmatpush1.msra.mxu0 %v1478
        %1652 = vmatprep.subr.mxu0 %v1477
        %1653 = vmatpush1.msra.mxu0 %v1476
        %1654 = vmatprep.subr.mxu0 0.0
        %1655 = vmatpush2.msra.mxu0 0.0
        %1656 = vmatprep.subr.mxu0 0.0
        %1657 = vmatpush2.msra.mxu0 0.0
        %1658 = vmatprep.subr.mxu0 0.0
        %1659 = vmatpush2.msra.mxu0 0.0
        %1660 = vmatprep.subr.mxu0 0.0
        %1661 = vmatpush2.msra.mxu0 0.0
        %1662 = vmatprep.subr.mxu0 0.0
        %1663 = vmatpush2.msra.mxu0 0.0
        %1664 = vmatprep.subr.mxu0 0.0
        %1665 = vmatpush2.msra.mxu0 0.0
        %1666 = vmatprep.subr.mxu0 0.0
        %1667 = vmatpush2.msra.mxu0 0.0
        %1668 = vmatprep.subr.mxu0 0.0
        %1669 = vmatpush2.msra.mxu0 0.0
        %1670 = vmatprep.subr.mxu0 0.0
        %1671 = vmatpush2.msra.mxu0 0.0
        %1672 = vmatprep.subr.mxu0 0.0
        %1673 = vmatpush2.msra.mxu0 0.0
        %1674 = vmatprep.subr.mxu0 0.0
        %1675 = vmatpush2.msra.mxu0 0.0
        %1676 = vmatprep.subr.mxu0 0.0
        %1677 = vmatpush2.msra.mxu0 0.0
        %1678 = vmatprep.subr.mxu0 0.0
        %1679 = vmatpush2.msra.mxu0 0.0
        %1680 = vmatprep.subr.mxu0 0.0
        %1681 = vmatpush2.msra.mxu0 0.0
        %1682 = vmatprep.subr.mxu0 0.0
        %1683 = vmatpush2.msra.mxu0 0.0
        %1684 = vmatprep.subr.mxu0 0.0
        %1685 = vmatpush2.msra.mxu0 0.0
        %1686 = vmatprep.mubr.f32.mxu0 0.0
        %1687 = vmatmul.mubr.f32.gmra.mxu0 %v1509
        %v1688 = vpop.f32.mrf.mxu0
        %v1689 = vadd.f32 %v1545, %v1688
        %v1690 = vpop.f32.mrf.mxu0
        %v1691 = vadd.f32 %v1545, %v1690
        %1692 = vmatprep.mubr.f32.mxu0 0.0
        %1693 = vmatmul.mubr.f32.gmra.mxu0 %v1510
        %v1694 = vpop.f32.mrf.mxu0
        %v1695 = vadd.f32 %v1550, %v1694
        %v1696 = vpop.f32.mrf.mxu0
        %v1697 = vadd.f32 %v1550, %v1696
        %1698 = vmatprep.mubr.f32.mxu0 0.0
        %1699 = vmatmul.mubr.f32.gmra.mxu0 %v1511
        %v1700 = vpop.f32.mrf.mxu0
        %v1701 = vadd.f32 %v1555, %v1700
        %v1702 = vpop.f32.mrf.mxu0
        %v1703 = vadd.f32 %v1555, %v1702
        %1704 = vmatprep.mubr.f32.mxu0 0.0
        %1705 = vmatmul.mubr.f32.gmra.mxu0 %v1512
        %v1706 = vpop.f32.mrf.mxu0
        %v1707 = vadd.f32 %v1560, %v1706
        %v1708 = vpop.f32.mrf.mxu0
        %v1709 = vadd.f32 %v1560, %v1708
        %1710 = vmatprep.mubr.f32.mxu0 0.0
        %1711 = vmatmul.mubr.f32.gmra.mxu0 %v1513
        %v1712 = vpop.f32.mrf.mxu0
        %v1713 = vadd.f32 %v1565, %v1712
        %v1714 = vpop.f32.mrf.mxu0
        %v1715 = vadd.f32 %v1565, %v1714
        %1716 = vmatprep.mubr.f32.mxu0 0.0
        %1717 = vmatmul.mubr.f32.gmra.mxu0 %v1514
        %v1718 = vpop.f32.mrf.mxu0
        %v1719 = vadd.f32 %v1570, %v1718
        %v1720 = vpop.f32.mrf.mxu0
        %v1721 = vadd.f32 %v1570, %v1720
        %1722 = vmatprep.mubr.f32.mxu0 0.0
        %1723 = vmatmul.mubr.f32.gmra.mxu0 %v1515
        %v1724 = vpop.f32.mrf.mxu0
        %v1725 = vadd.f32 %v1575, %v1724
        %v1726 = vpop.f32.mrf.mxu0
        %v1727 = vadd.f32 %v1575, %v1726
        %1728 = vmatprep.mubr.f32.mxu0 0.0
        %1729 = vmatmul.mubr.f32.gmra.mxu0 %v1516
        %v1730 = vpop.f32.mrf.mxu0
        %v1731 = vadd.f32 %v1580, %v1730
        %v1732 = vpop.f32.mrf.mxu0
        %v1733 = vadd.f32 %v1580, %v1732
        %1734 = vmatprep.mubr.f32.mxu0 0.0
        %1735 = vmatmul.mubr.f32.gmra.mxu0 %v1517
        %v1736 = vpop.f32.mrf.mxu0
        %v1737 = vadd.f32 %v1585, %v1736
        %v1738 = vpop.f32.mrf.mxu0
        %v1739 = vadd.f32 %v1585, %v1738
        %1740 = vmatprep.mubr.f32.mxu0 0.0
        %1741 = vmatmul.mubr.f32.gmra.mxu0 %v1518
        %v1742 = vpop.f32.mrf.mxu0
        %v1743 = vadd.f32 %v1590, %v1742
        %v1744 = vpop.f32.mrf.mxu0
        %v1745 = vadd.f32 %v1590, %v1744
        %1746 = vmatprep.mubr.f32.mxu0 0.0
        %1747 = vmatmul.mubr.f32.gmra.mxu0 %v1519
        %v1748 = vpop.f32.mrf.mxu0
        %v1749 = vadd.f32 %v1595, %v1748
        %v1750 = vpop.f32.mrf.mxu0
        %v1751 = vadd.f32 %v1595, %v1750
        %1752 = vmatprep.mubr.f32.mxu0 0.0
        %1753 = vmatmul.mubr.f32.gmra.mxu0 %v1520
        %v1754 = vpop.f32.mrf.mxu0
        %v1755 = vadd.f32 %v1600, %v1754
        %v1756 = vpop.f32.mrf.mxu0
        %v1757 = vadd.f32 %v1600, %v1756
        %1758 = vmatprep.mubr.f32.mxu0 0.0
        %1759 = vmatmul.mubr.f32.gmra.mxu0 %v1521
        %v1760 = vpop.f32.mrf.mxu0
        %v1761 = vadd.f32 %v1605, %v1760
        %v1762 = vpop.f32.mrf.mxu0
        %v1763 = vadd.f32 %v1605, %v1762
        %1764 = vmatprep.mubr.f32.mxu0 0.0
        %1765 = vmatmul.mubr.f32.gmra.mxu0 %v1522
        %v1766 = vpop.f32.mrf.mxu0
        %v1767 = vadd.f32 %v1610, %v1766
        %v1768 = vpop.f32.mrf.mxu0
        %v1769 = vadd.f32 %v1610, %v1768
        %1770 = vmatprep.mubr.f32.mxu0 0.0
        %1771 = vmatmul.mubr.f32.gmra.mxu0 %v1523
        %v1772 = vpop.f32.mrf.mxu0
        %v1773 = vadd.f32 %v1615, %v1772
        %v1774 = vpop.f32.mrf.mxu0
        %v1775 = vadd.f32 %v1615, %v1774
        %1776 = vmatprep.mubr.f32.mxu0 0.0
        %1777 = vmatmul.mubr.f32.gmra.mxu0 %v1524
        %v1778 = vpop.f32.mrf.mxu0
        %v1779 = vadd.f32 %v1620, %v1778
        %v1780 = vpop.f32.mrf.mxu0
        %v1781 = vadd.f32 %v1620, %v1780
        %1782 = vdwg.mxu0
        %v1783 = vtanh.pop %v1689
        %v1784 = vtanh.pop %v1691
        %v1785 = vtanh.pop %v1695
        %v1786 = vtanh.pop %v1697
        %v1787 = vtanh.pop %v1701
        %v1788 = vtanh.pop %v1703
        %v1789 = vtanh.pop %v1707
        %v1790 = vtanh.pop %v1709
        %v1791 = vtanh.pop %v1713
        %v1792 = vtanh.pop %v1715
        %v1793 = vtanh.pop %v1719
        %v1794 = vtanh.pop %v1721
        %v1795 = vtanh.pop %v1725
        %v1796 = vtanh.pop %v1727
        %v1797 = vtanh.pop %v1731
        %v1798 = vtanh.pop %v1733
        %v1799 = vtanh.pop %v1737
        %v1800 = vtanh.pop %v1739
        %v1801 = vtanh.pop %v1743
        %v1802 = vtanh.pop %v1745
        %v1803 = vtanh.pop %v1749
        %v1804 = vtanh.pop %v1751
        %v1805 = vtanh.pop %v1755
        %v1806 = vtanh.pop %v1757
        %v1807 = vtanh.pop %v1761
        %v1808 = vtanh.pop %v1763
        %v1809 = vtanh.pop %v1767
        %v1810 = vtanh.pop %v1769
        %v1811 = vtanh.pop %v1773
        %v1812 = vtanh.pop %v1775
        %v1813 = vtanh.pop %v1779
        %v1814 = vtanh.pop %v1781
        %v1815 = vld [vmem:[%s7] sm:$0x1]
        %v1816 = vld [vmem:[#allocation2] sm:$0x1]
        %1818 = vset.pattern.permute.xlu0 0
        %1819 = vperm.xlu0 %1818, %v1816
        %v1820 = vpop.permute.xlu0 %1819
        %v1822 = vlaneseq
        %v1823 = vshrl.u32 %v1822, 7
        %v1824 = vsub.s32 0, %v1823
        %v1825 = vrot.slane %v1820, %v1824
        %1826 = vmatprep.subr.mxu0 %v1814
        %1827 = vmatpush1.msra.mxu0 %v1813
        %1828 = vmatprep.subr.mxu0 %v1812
        %1829 = vmatpush1.msra.mxu0 %v1811
        %1830 = vmatprep.subr.mxu0 %v1810
        %1831 = vmatpush1.msra.mxu0 %v1809
        %1832 = vmatprep.subr.mxu0 %v1808
        %1833 = vmatpush1.msra.mxu0 %v1807
        %1834 = vmatprep.subr.mxu0 %v1806
        %1835 = vmatpush1.msra.mxu0 %v1805
        %1836 = vmatprep.subr.mxu0 %v1804
        %1837 = vmatpush1.msra.mxu0 %v1803
        %1838 = vmatprep.subr.mxu0 %v1802
        %1839 = vmatpush1.msra.mxu0 %v1801
        %1840 = vmatprep.subr.mxu0 %v1800
        %1841 = vmatpush1.msra.mxu0 %v1799
        %1842 = vmatprep.subr.mxu0 %v1798
        %1843 = vmatpush1.msra.mxu0 %v1797
        %1844 = vmatprep.subr.mxu0 %v1796
        %1845 = vmatpush1.msra.mxu0 %v1795
        %1846 = vmatprep.subr.mxu0 %v1794
        %1847 = vmatpush1.msra.mxu0 %v1793
        %1848 = vmatprep.subr.mxu0 %v1792
        %1849 = vmatpush1.msra.mxu0 %v1791
        %1850 = vmatprep.subr.mxu0 %v1790
        %1851 = vmatpush1.msra.mxu0 %v1789
        %1852 = vmatprep.subr.mxu0 %v1788
        %1853 = vmatpush1.msra.mxu0 %v1787
        %1854 = vmatprep.subr.mxu0 %v1786
        %1855 = vmatpush1.msra.mxu0 %v1785
        %1856 = vmatprep.subr.mxu0 %v1784
        %1857 = vmatpush1.msra.mxu0 %v1783
        %1858 = vmatprep.subr.mxu0 0.0
        %1859 = vmatpush2.msra.mxu0 0.0
        %1860 = vmatprep.subr.mxu0 0.0
        %1861 = vmatpush2.msra.mxu0 0.0
        %1862 = vmatprep.subr.mxu0 0.0
        %1863 = vmatpush2.msra.mxu0 0.0
        %1864 = vmatprep.subr.mxu0 0.0
        %1865 = vmatpush2.msra.mxu0 0.0
        %1866 = vmatprep.subr.mxu0 0.0
        %1867 = vmatpush2.msra.mxu0 0.0
        %1868 = vmatprep.subr.mxu0 0.0
        %1869 = vmatpush2.msra.mxu0 0.0
        %1870 = vmatprep.subr.mxu0 0.0
        %1871 = vmatpush2.msra.mxu0 0.0
        %1872 = vmatprep.subr.mxu0 0.0
        %1873 = vmatpush2.msra.mxu0 0.0
        %1874 = vmatprep.subr.mxu0 0.0
        %1875 = vmatpush2.msra.mxu0 0.0
        %1876 = vmatprep.subr.mxu0 0.0
        %1877 = vmatpush2.msra.mxu0 0.0
        %1878 = vmatprep.subr.mxu0 0.0
        %1879 = vmatpush2.msra.mxu0 0.0
        %1880 = vmatprep.subr.mxu0 0.0
        %1881 = vmatpush2.msra.mxu0 0.0
        %1882 = vmatprep.subr.mxu0 0.0
        %1883 = vmatpush2.msra.mxu0 0.0
        %1884 = vmatprep.subr.mxu0 0.0
        %1885 = vmatpush2.msra.mxu0 0.0
        %1886 = vmatprep.subr.mxu0 0.0
        %1887 = vmatpush2.msra.mxu0 0.0
        %1888 = vmatprep.subr.mxu0 0.0
        %1889 = vmatpush2.msra.mxu0 0.0
        %1890 = vmatprep.mubr.f32.mxu0 0.0
        %1891 = vmatmul.mubr.f32.gmra.mxu0 %v1815
        %v1892 = vpop.f32.mrf.mxu0
        %v1893 = vadd.f32 %v1825, %v1892
        %v1894 = vpop.f32.mrf.mxu0
        %v1895 = vadd.f32 %v1825, %v1894
        %1896 = vdwg.mxu0
        %v1899 = vcombine.low %v1893, %v1895
        %v1901 = vunpack.c.l.s4 1966171168
        %v1902 = vunpack.c.0.s8 %v1901
        %v1903 = vlaneseq
        %v1904 = vshrl.u32 %v1903, 7
        %v1905 = vsub.s32 %v1902, %v1904
        %v1906 = vrot.slane %v1899, %v1905
        %v1908 = vunpack.c.l.s4 1966171168
        %v1909 = vunpack.c.0.s8 %v1908
        %v1910 = vlaneseq
        %v1911 = vshrl.u32 %v1910, 7
        %v1912 = vsub.s32 %v1909, %v1911
        %v1913 = vrot.slane %v1906, %v1912
        %v1915 = vlaneseq
        %vm1916 = vcmp.ge.s32.totalorder %v1915, 0
        %vm1917 = vcmp.lt.s32.totalorder %v1915, 256
        %vm1918 = vmand %vm1916, %vm1917
        %1919 = vst.msk [vmem:[%s342] sm:$0x3] %vm1918, %v1913
        %s1920 = sand.u32 %s232, 1
        %s1921 = scalar_lea.sflag [#allocation4], %s1920
        %s1922 = sand.u32 %s232, 1
        %s1923 = smul.addr %s1922, 2
        %s1924 = scalar_lea.vmem [#allocation3], %s1923
        // Predicated region
        $region57: #{tpu_custom_call.1} parent=55 // pred_check
          %p1925 = pneg %p242
        $region58: #{tpu_custom_call.1} parent=55 // pred_check_branch
          %1927 = sbr.rel (%p1925) target = $region60
        $region59: #{tpu_custom_call.1} parent=55 // pred_region
          %s1928 = smul.u32 2, %s25
          %s1930 = ssub.s32 32, 32
          %1931 = vsyncadd %s1921, %s1930
          %s1932 = smul.addr %s1928, 16
          %s1933 = scalar_lea.hbm %s9, %s1932
          %s1935 = sshll.u32 %s1924, 4
          %s1936 = int_to_ptr.vmem [resolvable:$true] %s1935
          %1938 = dma.vmem_to_hbm [thread:$0]  %s1936, 32, %s1933, %s1921
        $region60: #{tpu_custom_call.1} parent=55 // pred_fallthru
          _
      $region56: #{tpu_custom_call.1} parent=5 // pred_fallthru
        _
      %p1939 = scmp.le.s32.totalorder 2, %s20
      // Predicated region
      $region61: #{tpu_custom_call.1} parent=5 // pred_check
        %p1940 = pneg %p1939
      $region62: #{tpu_custom_call.1} parent=5 // pred_check_branch
        %1942 = sbr.rel (%p1940) target = $region64
      $region63: #{tpu_custom_call.1} parent=5 // pred_region
        %s1943 = ssub.s32 %s20, 2
        // Predicated region
        $region65: #{tpu_custom_call.1} parent=63 // pred_check
          %p1944 = pneg %p248
        $region66: #{tpu_custom_call.1} parent=63 // pred_check_branch
          %1946 = sbr.rel (%p1944) target = $region68
        $region67: #{tpu_custom_call.1} parent=63 // pred_region
          %s1947 = sand.u32 %s233, 1
          %s1948 = scalar_lea.sflag [#allocation4], %s1947
          %s1949 = sand.u32 %s233, 1
          %s1950 = smul.addr %s1949, 2
          %s1951 = scalar_lea.vmem [#allocation3], %s1950
          %1952 = dma.done %s1948, 32
        $region68: #{tpu_custom_call.1} parent=63 // pred_fallthru
          _
      $region64: #{tpu_custom_call.1} parent=5 // pred_fallthru
        _
    $region6: #{tpu_custom_call.1} parent=1 // loop_footer
      %s24 = sadd.s32 1, %s20
    $region7: #{tpu_custom_call.1} parent=1 // loop_footer_branch
      %19 = sbr.rel target = $region3
    $region8: #{tpu_custom_call.1} parent=1 // loop_exit
      _
    %1953 = vsyncpa [#allocation4], 1
    %s1954 = scalar_lea.sflag [#allocation4], 1
    %1955 = vsyncpa %s1954, 1

</llo_original>
